<compile_context>
chip_gen: v5e
topology: v5e:2x2
jax: 0.10.0
libtpu: 0.0.40
codegen_flags: <defaults>
</compile_context>

<pallas_src>
import functools

import jax
import jax.numpy as jnp
from jax.experimental import pallas as pl
from jax.experimental.pallas import tpu as pltpu

LANE = 128  # TPU lane width — pad feature/class dims to this for dense vreg/store use.


def _round_up(x, m):
    return (x + m - 1) // m * m


# ----------------------------- kernels --------------------------------------

def xw_kernel(x_ref, w_ref, o_ref):
    """Feature transform: one row tile of X @ W (bf16 in, f32 accumulate, bf16 out)."""
    o_ref[...] = jnp.dot(
        x_ref[...], w_ref[...], preferred_element_type=jnp.float32
    ).astype(o_ref.dtype)


def prop_relu_kernel(a_ref, xw_ref, b_ref, o_ref):
    """Layer-1 propagation: relu(A_tile @ XW + b)."""
    acc = jnp.dot(a_ref[...], xw_ref[...], preferred_element_type=jnp.float32)
    o_ref[...] = jnp.maximum(acc + b_ref[...], 0.0).astype(o_ref.dtype)


def prop_logsoftmax_kernel(a_ref, xw_ref, b_ref, o_ref, *, num_classes):
    """Layer-2 propagation: log_softmax(A_tile @ XW + b) over the real classes only."""
    acc = jnp.dot(a_ref[...], xw_ref[...], preferred_element_type=jnp.float32)
    logits = acc + b_ref[...]
    # Zero-padded class lanes must not take part in the softmax.
    col = jax.lax.broadcasted_iota(jnp.int32, logits.shape, dimension=1)
    logits = jnp.where(col < num_classes, logits, -1e30)
    m = jnp.max(logits, axis=-1, keepdims=True)
    shifted = logits - m
    lse = jnp.log(jnp.sum(jnp.exp(shifted), axis=-1, keepdims=True))
    o_ref[...] = (shifted - lse).astype(o_ref.dtype)


# ------------------------- pallas_call wrappers ------------------------------

def _transform(x, w, row_tile):
    """Row-tiled X @ W.  x: (Np, K) bf16, w: (K, Hp) bf16 -> (Np, Hp) bf16."""
    n, k = x.shape
    hp = w.shape[1]
    return pl.pallas_call(
        xw_kernel,
        out_shape=jax.ShapeDtypeStruct((n, hp), jnp.bfloat16),
        grid=(n // row_tile,),
        in_specs=[
            pl.BlockSpec((row_tile, k), lambda i: (i, 0)),
            pl.BlockSpec((k, hp), lambda i: (0, 0)),   # W resident across steps
        ],
        out_specs=pl.BlockSpec((row_tile, hp), lambda i: (i, 0)),
        compiler_params=pltpu.CompilerParams(dimension_semantics=("parallel",)),
    )(x, w)


def _propagate(kernel, a, xw, b, out_dtype, row_tile):
    """Row-tiled A_hat @ XW with fused epilogue. a: (Np, Np) bf16, xw: (Np, Hp) bf16."""
    n = a.shape[0]
    hp = xw.shape[1]
    return pl.pallas_call(
        kernel,
        out_shape=jax.ShapeDtypeStruct((n, hp), out_dtype),
        grid=(n // row_tile,),
        in_specs=[
            # A_hat row tile, full contraction dim; Pallas double-buffers it, so the
            # DMA of tile i+1 overlaps the matmul on tile i (the kernel is HBM-bound
            # on exactly this stream).
            pl.BlockSpec((row_tile, n), lambda i: (i, 0)),
            # XW and bias map to the same block every step -> stay resident in VMEM.
            pl.BlockSpec((n, hp), lambda i: (0, 0)),
            pl.BlockSpec((1, hp), lambda i: (0, 0)),
        ],
        out_specs=pl.BlockSpec((row_tile, hp), lambda i: (i, 0)),
        compiler_params=pltpu.CompilerParams(dimension_semantics=("parallel",)),
    )(a, xw, b)


# ------------------------------ forward --------------------------------------

def gcn_forward(a_hat, x, w1, b1, w2, b2, *, row_tile=256):
    n, f = x.shape
    h = w1.shape[1]
    c = w2.shape[1]

    n_p = _round_up(n, row_tile)
    h_p = _round_up(h, LANE)
    c_p = _round_up(c, LANE)

    # Wrapper-side layout plumbing: pad node rows to the row tile, pad feature/class
    # dims to 128 lanes, cast matmul operands to bf16 (padding is all zeros, so it
    # contributes nothing to the real outputs and is sliced off at the end).
    a_p = jnp.zeros((n_p, n_p), jnp.bfloat16).at[:n, :n].set(a_hat.astype(jnp.bfloat16))
    x_p = jnp.zeros((n_p, f), jnp.bfloat16).at[:n, :].set(x.astype(jnp.bfloat16))
    w1_p = jnp.zeros((f, h_p), jnp.bfloat16).at[:, :h].set(w1.astype(jnp.bfloat16))
    b1_p = jnp.zeros((1, h_p), jnp.float32).at[:, :h].set(b1.reshape(1, h).astype(jnp.float32))
    w2_p = jnp.zeros((h_p, c_p), jnp.bfloat16).at[:h, :c].set(w2.astype(jnp.bfloat16))
    b2_p = jnp.zeros((1, c_p), jnp.float32).at[:, :c].set(b2.reshape(1, c).astype(jnp.float32))

    # ---- GCNConv layer 1:  relu(A_hat @ (X @ W1) + b1) ----
    xw1 = _transform(x_p, w1_p, row_tile)                                 # (Np, Hp) bf16
    h1 = _propagate(prop_relu_kernel, a_p, xw1, b1_p, jnp.bfloat16, row_tile)

    # F.dropout(training=...) — inference/eval semantics => identity.
    # TODO(synk): training-mode dropout needs pltpu.prng_seed/prng_random_bits in-kernel.

    # ---- GCNConv layer 2:  log_softmax(A_hat @ (H1 @ W2) + b2) ----
    hw2 = _transform(h1, w2_p, row_tile)                                  # (Np, Cp) bf16
    out_p = _propagate(
        functools.partial(prop_logsoftmax_kernel, num_classes=c),
        a_p, hw2, b2_p, jnp.float32, row_tile)

    return out_p[:n, :c]


# --------------------------- graph preprocessing ------------------------------

def build_normalized_adjacency(edge_index, num_nodes):
    """Dense D^{-1/2}(A+I)D^{-1/2} from a COO edge_index (2, E). Plain-JAX glue."""
    src, dst = edge_index[0], edge_index[1]
    adj = jnp.zeros((num_nodes, num_nodes), jnp.float32)
    adj = adj.at[src, dst].set(1.0)
    adj = adj.at[dst, src].set(1.0)                       # undirected (Cora-style)
    idx = jnp.arange(num_nodes)
    adj = adj.at[idx, idx].set(1.0)                       # self-loops with weight exactly 1
    deg = jnp.sum(adj, axis=1)
    d_inv_sqrt = jnp.where(deg > 0, 1.0 / jnp.sqrt(deg), 0.0)
    return adj * d_inv_sqrt[:, None] * d_inv_sqrt[None, :]


# ---------------------------------- demo --------------------------------------

if __name__ == "__main__":
    # Small synthetic Cora stand-in: N nodes, F_IN in-features, hidden=16, CLASSES classes.
    N, F_IN, HIDDEN, CLASSES = 300, 48, 16, 8
    E = 900  # random undirected edges

    key = jax.random.PRNGKey(0)
    k_x, k_e, k_w1, k_w2 = jax.random.split(key, 4)

    x = jax.random.normal(k_x, (N, F_IN), dtype=jnp.float32)
    edge_index = jax.random.randint(k_e, (2, E), 0, N, dtype=jnp.int32)
    a_hat = build_normalized_adjacency(edge_index, N)

    # Glorot-style init, zero bias (matches GCNConv parameter shapes).
    w1 = jax.random.normal(k_w1, (F_IN, HIDDEN), jnp.float32) * (2.0 / (F_IN + HIDDEN)) ** 0.5
    b1 = jnp.zeros((HIDDEN,), jnp.float32)
    w2 = jax.random.normal(k_w2, (HIDDEN, CLASSES), jnp.float32) * (2.0 / (HIDDEN + CLASSES)) ** 0.5
    b2 = jnp.zeros((CLASSES,), jnp.float32)

    gcn = jax.jit(functools.partial(gcn_forward, row_tile=128))  # small demo -> small row tile
    out = jax.block_until_ready(gcn(a_hat, x, w1, b1, w2, b2))

    # Pure-JAX f32 reference for a (loose, bf16-tolerant) correctness check.
    def reference(a, xx, ww1, bb1, ww2, bb2):
        h1 = jnp.maximum(a @ (xx @ ww1) + bb1, 0.0)
        return jax.nn.log_softmax(a @ (h1 @ ww2) + bb2, axis=-1)

    ref = reference(a_hat, x, w1, b1, w2, b2)

    assert out.shape == (N, CLASSES)
    row_sums = jnp.exp(out).sum(axis=1)
    assert bool(jnp.all(jnp.abs(row_sums - 1.0) < 1e-3)), "log_softmax rows must sum to 1"
    assert bool(jnp.max(jnp.abs(out - ref)) < 0.15), "kernel deviates from f32 reference"

    print("KERNEL_OK")
</pallas_src>

<mosaic_0001>
module attributes {stable_mosaic.version = 11 : i64} {
  func.func @xw_kernel(%arg0: i32, %arg1: memref<128x48xbf16, #tpu.memory_space<vmem>>, %arg2: memref<48x128xbf16, #tpu.memory_space<vmem>>, %arg3: memref<128x128xbf16, #tpu.memory_space<vmem>>) attributes {dimension_semantics = [#tpu.dimension_semantics<parallel>], iteration_bounds = array<i64: 3>, scalar_prefetch = 0 : i64, scratch_operands = 0 : i64, tpu.core_type = #tpu.core_type<tc>, window_params = [{transform_indices = @transform_0, window_bounds = array<i64: 128, 48>}, {pipeline_mode = #tpu.pipeline_mode<synchronous>, transform_indices = @transform_1, window_bounds = array<i64: 48, 128>}, {transform_indices = @transform_2, window_bounds = array<i64: 128, 128>}]} {
    %c0 = arith.constant 0 : index
    %c0_0 = arith.constant 0 : index
    %0 = vector.load %arg1[%c0, %c0_0] : memref<128x48xbf16, #tpu.memory_space<vmem>>, vector<128x48xbf16>
    %c0_1 = arith.constant 0 : index
    %c0_2 = arith.constant 0 : index
    %1 = vector.load %arg2[%c0_1, %c0_2] : memref<48x128xbf16, #tpu.memory_space<vmem>>, vector<48x128xbf16>
    %cst = arith.constant dense<0.000000e+00> : vector<128x128xf32>
    %2 = tpu.matmul %0, %1, %cst {dimension_numbers = #tpu.dot_dimension_numbers<[1], [0], [0], [1], [0, 0, 1, 1], [], []>} : vector<128x48xbf16>, vector<48x128xbf16>, vector<128x128xf32> -> vector<128x128xf32>
    %3 = arith.truncf %2 : vector<128x128xf32> to vector<128x128xbf16>
    %c0_3 = arith.constant 0 : index
    %c0_4 = arith.constant 0 : index
    %4 = vector.load %arg3[%c0_3, %c0_4] : memref<128x128xbf16, #tpu.memory_space<vmem>>, vector<128x128xbf16>
    tpu.vector_store %arg3[%c0_3, %c0_4], %3 {strides = array<i32>} : memref<128x128xbf16, #tpu.memory_space<vmem>>, vector<128x128xbf16>,
    return
  }
  func.func @transform_0(%arg0: i32) -> (i32, i32) {
    %c0_i32 = arith.constant 0 : i32
    %c0_i32_0 = arith.constant 0 : i32
    return %arg0, %c0_i32 : i32, i32
  }
  func.func @transform_1(%arg0: i32) -> (i32, i32) {
    %c0_i32 = arith.constant 0 : i32
    %c0_i32_0 = arith.constant 0 : i32
    %c0_i32_1 = arith.constant 0 : i32
    return %c0_i32, %c0_i32_0 : i32, i32
  }
  func.func @transform_2(%arg0: i32) -> (i32, i32) {
    %c0_i32 = arith.constant 0 : i32
    %c0_i32_0 = arith.constant 0 : i32
    return %arg0, %c0_i32 : i32, i32
  }
}

module attributes {stable_mosaic.version = 11 : i64} {
  func.func @prop_relu_kernel(%arg0: i32, %arg1: memref<128x384xbf16, #tpu.memory_space<vmem>>, %arg2: memref<384x128xbf16, #tpu.memory_space<vmem>>, %arg3: memref<1x128xf32, #tpu.memory_space<vmem>>, %arg4: memref<128x128xbf16, #tpu.memory_space<vmem>>) attributes {dimension_semantics = [#tpu.dimension_semantics<parallel>], iteration_bounds = array<i64: 3>, scalar_prefetch = 0 : i64, scratch_operands = 0 : i64, tpu.core_type = #tpu.core_type<tc>, window_params = [{transform_indices = @transform_0, window_bounds = array<i64: 128, 384>}, {pipeline_mode = #tpu.pipeline_mode<synchronous>, transform_indices = @transform_1, window_bounds = array<i64: 384, 128>}, {pipeline_mode = #tpu.pipeline_mode<synchronous>, transform_indices = @transform_2, window_bounds = array<i64: 1, 128>}, {transform_indices = @transform_3, window_bounds = array<i64: 128, 128>}]} {
    %c0 = arith.constant 0 : index
    %c0_0 = arith.constant 0 : index
    %0 = vector.load %arg1[%c0, %c0_0] : memref<128x384xbf16, #tpu.memory_space<vmem>>, vector<128x384xbf16>
    %c0_1 = arith.constant 0 : index
    %c0_2 = arith.constant 0 : index
    %1 = vector.load %arg2[%c0_1, %c0_2] : memref<384x128xbf16, #tpu.memory_space<vmem>>, vector<384x128xbf16>
    %cst = arith.constant dense<0.000000e+00> : vector<128x128xf32>
    %2 = tpu.matmul %0, %1, %cst {dimension_numbers = #tpu.dot_dimension_numbers<[1], [0], [0], [1], [0, 0, 1, 1], [], []>} : vector<128x384xbf16>, vector<384x128xbf16>, vector<128x128xf32> -> vector<128x128xf32>
    %c0_3 = arith.constant 0 : index
    %c0_4 = arith.constant 0 : index
    %3 = vector.load %arg3[%c0_3, %c0_4] : memref<1x128xf32, #tpu.memory_space<vmem>>, vector<1x128xf32>
    %4 = vector.broadcast %3 : vector<1x128xf32> to vector<128x128xf32>
    %5 = arith.addf %2, %4 : vector<128x128xf32>
    %cst_5 = arith.constant 0.000000e+00 : f32
    %6 = vector.broadcast %cst_5 : f32 to vector<128x128xf32>
    %7 = arith.maximumf %5, %6 : vector<128x128xf32>
    %8 = arith.truncf %7 : vector<128x128xf32> to vector<128x128xbf16>
    %c0_6 = arith.constant 0 : index
    %c0_7 = arith.constant 0 : index
    %9 = vector.load %arg4[%c0_6, %c0_7] : memref<128x128xbf16, #tpu.memory_space<vmem>>, vector<128x128xbf16>
    tpu.vector_store %arg4[%c0_6, %c0_7], %8 {strides = array<i32>} : memref<128x128xbf16, #tpu.memory_space<vmem>>, vector<128x128xbf16>,
    return
  }
  func.func @transform_0(%arg0: i32) -> (i32, i32) {
    %c0_i32 = arith.constant 0 : i32
    %c0_i32_0 = arith.constant 0 : i32
    return %arg0, %c0_i32 : i32, i32
  }
  func.func @transform_1(%arg0: i32) -> (i32, i32) {
    %c0_i32 = arith.constant 0 : i32
    %c0_i32_0 = arith.constant 0 : i32
    %c0_i32_1 = arith.constant 0 : i32
    return %c0_i32, %c0_i32_0 : i32, i32
  }
  func.func @transform_2(%arg0: i32) -> (i32, i32) {
    %c0_i32 = arith.constant 0 : i32
    %c0_i32_0 = arith.constant 0 : i32
    %c0_i32_1 = arith.constant 0 : i32
    return %c0_i32, %c0_i32_0 : i32, i32
  }
  func.func @transform_3(%arg0: i32) -> (i32, i32) {
    %c0_i32 = arith.constant 0 : i32
    %c0_i32_0 = arith.constant 0 : i32
    return %arg0, %c0_i32 : i32, i32
  }
}

module attributes {stable_mosaic.version = 11 : i64} {
  func.func @xw_kernel(%arg0: i32, %arg1: memref<128x128xbf16, #tpu.memory_space<vmem>>, %arg2: memref<128x128xbf16, #tpu.memory_space<vmem>>, %arg3: memref<128x128xbf16, #tpu.memory_space<vmem>>) attributes {dimension_semantics = [#tpu.dimension_semantics<parallel>], iteration_bounds = array<i64: 3>, scalar_prefetch = 0 : i64, scratch_operands = 0 : i64, tpu.core_type = #tpu.core_type<tc>, window_params = [{transform_indices = @transform_0, window_bounds = array<i64: 128, 128>}, {pipeline_mode = #tpu.pipeline_mode<synchronous>, transform_indices = @transform_1, window_bounds = array<i64: 128, 128>}, {transform_indices = @transform_2, window_bounds = array<i64: 128, 128>}]} {
    %c0 = arith.constant 0 : index
    %c0_0 = arith.constant 0 : index
    %0 = vector.load %arg1[%c0, %c0_0] : memref<128x128xbf16, #tpu.memory_space<vmem>>, vector<128x128xbf16>
    %c0_1 = arith.constant 0 : index
    %c0_2 = arith.constant 0 : index
    %1 = vector.load %arg2[%c0_1, %c0_2] : memref<128x128xbf16, #tpu.memory_space<vmem>>, vector<128x128xbf16>
    %cst = arith.constant dense<0.000000e+00> : vector<128x128xf32>
    %2 = tpu.matmul %0, %1, %cst {dimension_numbers = #tpu.dot_dimension_numbers<[1], [0], [0], [1], [0, 0, 1, 1], [], []>} : vector<128x128xbf16>, vector<128x128xbf16>, vector<128x128xf32> -> vector<128x128xf32>
    %3 = arith.truncf %2 : vector<128x128xf32> to vector<128x128xbf16>
    %c0_3 = arith.constant 0 : index
    %c0_4 = arith.constant 0 : index
    %4 = vector.load %arg3[%c0_3, %c0_4] : memref<128x128xbf16, #tpu.memory_space<vmem>>, vector<128x128xbf16>
    tpu.vector_store %arg3[%c0_3, %c0_4], %3 {strides = array<i32>} : memref<128x128xbf16, #tpu.memory_space<vmem>>, vector<128x128xbf16>,
    return
  }
  func.func @transform_0(%arg0: i32) -> (i32, i32) {
    %c0_i32 = arith.constant 0 : i32
    %c0_i32_0 = arith.constant 0 : i32
    return %arg0, %c0_i32 : i32, i32
  }
  func.func @transform_1(%arg0: i32) -> (i32, i32) {
    %c0_i32 = arith.constant 0 : i32
    %c0_i32_0 = arith.constant 0 : i32
    %c0_i32_1 = arith.constant 0 : i32
    return %c0_i32, %c0_i32_0 : i32, i32
  }
  func.func @transform_2(%arg0: i32) -> (i32, i32) {
    %c0_i32 = arith.constant 0 : i32
    %c0_i32_0 = arith.constant 0 : i32
    return %arg0, %c0_i32 : i32, i32
  }
}

module attributes {stable_mosaic.version = 11 : i64} {
  func.func @prop_logsoftmax_kernel(%arg0: i32, %arg1: memref<128x384xbf16, #tpu.memory_space<vmem>>, %arg2: memref<384x128xbf16, #tpu.memory_space<vmem>>, %arg3: memref<1x128xf32, #tpu.memory_space<vmem>>, %arg4: memref<128x128xf32, #tpu.memory_space<vmem>>) attributes {dimension_semantics = [#tpu.dimension_semantics<parallel>], iteration_bounds = array<i64: 3>, scalar_prefetch = 0 : i64, scratch_operands = 0 : i64, tpu.core_type = #tpu.core_type<tc>, window_params = [{transform_indices = @transform_0, window_bounds = array<i64: 128, 384>}, {pipeline_mode = #tpu.pipeline_mode<synchronous>, transform_indices = @transform_1, window_bounds = array<i64: 384, 128>}, {pipeline_mode = #tpu.pipeline_mode<synchronous>, transform_indices = @transform_2, window_bounds = array<i64: 1, 128>}, {transform_indices = @transform_3, window_bounds = array<i64: 128, 128>}]} {
    %c0 = arith.constant 0 : index
    %c0_0 = arith.constant 0 : index
    %0 = vector.load %arg1[%c0, %c0_0] : memref<128x384xbf16, #tpu.memory_space<vmem>>, vector<128x384xbf16>
    %c0_1 = arith.constant 0 : index
    %c0_2 = arith.constant 0 : index
    %1 = vector.load %arg2[%c0_1, %c0_2] : memref<384x128xbf16, #tpu.memory_space<vmem>>, vector<384x128xbf16>
    %cst = arith.constant dense<0.000000e+00> : vector<128x128xf32>
    %2 = tpu.matmul %0, %1, %cst {dimension_numbers = #tpu.dot_dimension_numbers<[1], [0], [0], [1], [0, 0, 1, 1], [], []>} : vector<128x384xbf16>, vector<384x128xbf16>, vector<128x128xf32> -> vector<128x128xf32>
    %c0_3 = arith.constant 0 : index
    %c0_4 = arith.constant 0 : index
    %3 = vector.load %arg3[%c0_3, %c0_4] : memref<1x128xf32, #tpu.memory_space<vmem>>, vector<1x128xf32>
    %4 = vector.broadcast %3 : vector<1x128xf32> to vector<128x128xf32>
    %5 = arith.addf %2, %4 : vector<128x128xf32>
    %6 = tpu.iota {dimensions = array<i32: 1>} : vector<128x128xi32>
    %c8_i32 = arith.constant 8 : i32
    %7 = vector.broadcast %c8_i32 : i32 to vector<128x128xi32>
    %8 = arith.cmpi slt, %6, %7 : vector<128x128xi32>
    %cst_5 = arith.constant -1.000000e+30 : f32
    %9 = vector.broadcast %cst_5 : f32 to vector<128x128xf32>
    %10 = arith.select %8, %5, %9 : vector<128x128xi1>, vector<128x128xf32>
    %cst_6 = arith.constant dense<0xFF800000> : vector<128xf32>
    %11 = vector.multi_reduction <maximumf>, %10, %cst_6 [1] : vector<128x128xf32> to vector<128xf32>
    %12 = vector.shape_cast %11 : vector<128xf32> to vector<128x1xf32>
    %13 = vector.broadcast %12 : vector<128x1xf32> to vector<128x128xf32>
    %14 = arith.subf %10, %13 : vector<128x128xf32>
    %15 = math.exp %14 : vector<128x128xf32>
    %cst_7 = arith.constant dense<0.000000e+00> : vector<128xf32>
    %16 = vector.multi_reduction <add>, %15, %cst_7 [1] : vector<128x128xf32> to vector<128xf32>
    %17 = vector.shape_cast %16 : vector<128xf32> to vector<128x1xf32>
    %18 = math.log %17 : vector<128x1xf32>
    %19 = vector.broadcast %18 : vector<128x1xf32> to vector<128x128xf32>
    %20 = arith.subf %14, %19 : vector<128x128xf32>
    %c0_8 = arith.constant 0 : index
    %c0_9 = arith.constant 0 : index
    %21 = vector.load %arg4[%c0_8, %c0_9] : memref<128x128xf32, #tpu.memory_space<vmem>>, vector<128x128xf32>
    tpu.vector_store %arg4[%c0_8, %c0_9], %20 {strides = array<i32>} : memref<128x128xf32, #tpu.memory_space<vmem>>, vector<128x128xf32>,
    return
  }
  func.func @transform_0(%arg0: i32) -> (i32, i32) {
    %c0_i32 = arith.constant 0 : i32
    %c0_i32_0 = arith.constant 0 : i32
    return %arg0, %c0_i32 : i32, i32
  }
  func.func @transform_1(%arg0: i32) -> (i32, i32) {
    %c0_i32 = arith.constant 0 : i32
    %c0_i32_0 = arith.constant 0 : i32
    %c0_i32_1 = arith.constant 0 : i32
    return %c0_i32, %c0_i32_0 : i32, i32
  }
  func.func @transform_2(%arg0: i32) -> (i32, i32) {
    %c0_i32 = arith.constant 0 : i32
    %c0_i32_0 = arith.constant 0 : i32
    %c0_i32_1 = arith.constant 0 : i32
    return %c0_i32, %c0_i32_0 : i32, i32
  }
  func.func @transform_3(%arg0: i32) -> (i32, i32) {
    %c0_i32 = arith.constant 0 : i32
    %c0_i32_0 = arith.constant 0 : i32
    return %arg0, %c0_i32 : i32, i32
  }
}

</mosaic_0001>

<llo_original>
// kernel: gcn_forward.4
$region0: #{gcn_forward.4}
  #allocation0 [shape = 'u32[]', space=smem, size = 0x4, offset = 0x4, fixed_abs, tag = 'smem constant byte address 0x4 - core index']
  #allocation1 [shape = 'u32[72,128]{1,0:T(1,128)}', space=vmem, size = 0x9000, scoped, tag = 'internal scratch']
  %s0 = inlined_call_operand.vmem [shape: bf16[384,48], index: 0, kind: input, shape index: {}]
  %s1 = inlined_call_operand.vmem [shape: bf16[48,128], index: 1, kind: input, shape index: {}]
  %s2 = inlined_call_operand.vmem [shape: bf16[384,128], index: 2, kind: output, shape index: {}]
  %s3 = sld [smem:[#allocation0]]
  $region41: #{gcn_forward.4} parent=0
    _
  %s5 = ssub.s32 1, %s3
  %s6 = scalar_select 0, %s5, %s3
  loop: start=0, step=1, limit=5
  $region2: #{gcn_forward.4} parent=0 // loop_pre_header
    _
  $region3: #{gcn_forward.4} parent=0 // loop_header
    %s8 = sphi 0, %s12
    %p9 = scmp.ge.s32.totalorder %s8, 5
    %s18 = sphi 0, %s20
    %s21 = sphi 0, %s18
    %s22 = sphi 0, %s21
    %s38 = sphi 0, %s22
    %s42 = sphi 0, %s42
    %s44 = sphi 0, %s42
    %s45 = sphi 0, %s44
    %s59 = sphi 0, %s45
    %s65 = sphi 0, %s67
    %s68 = sphi 0, %s65
    %s69 = sphi 0, %s68
    %s85 = sphi 0, %s69
  $region4: #{gcn_forward.4} parent=0 // loop_header_branch
    %11 = sbr.rel (%p9) target = $region8
  $region5: #{gcn_forward.4} parent=0 // loop_body
    %s13 = ssub.s32 %s8, 1
    %s14 = ssub.s32 %s8, 2
    %s15 = sadd.s32 %s8, 1
    %s16 = ssub.s32 %s8, %s15
    %p17 = scmp.eq.s32.totalorder %s16, 0
    %s19 = sadd.s32 %s18, 1
    %s20 = scalar_select %p17, %s18, %s19
    %p23 = pneg %p17
    %p24 = scmp.eq.s32.totalorder %s8, 2
    %p25 = por %p23, %p24
    %p26 = scmp.ne.s32.totalorder %s18, %s21
    %p27 = scmp.eq.s32.totalorder %s8, 0
    %p28 = por %p26, %p27
    %p29 = scmp.ne.s32.totalorder %s18, %s21
    %p30 = scmp.eq.s32.totalorder %s13, 2
    %p31 = por %p29, %p30
    %p32 = scmp.ne.s32.totalorder %s21, %s22
    %p33 = scmp.eq.s32.totalorder %s13, 0
    %p34 = por %p32, %p33
    %p35 = scmp.ne.s32.totalorder %s21, %s22
    %p36 = scmp.eq.s32.totalorder %s14, 2
    %p37 = por %p35, %p36
    %p39 = scmp.ne.s32.totalorder %s22, %s38
    %p40 = scmp.eq.s32.totalorder %s14, 0
    %p41 = por %p39, %p40
    %s43 = sadd.s32 %s42, 1
    %p46 = scmp.eq.s32.totalorder %s8, 2
    %p47 = scmp.ne.s32.totalorder %s42, %s44
    %p48 = scmp.eq.s32.totalorder %s8, 0
    %p49 = por %p47, %p48
    %p50 = scmp.ne.s32.totalorder %s42, %s44
    %p51 = scmp.eq.s32.totalorder %s13, 2
    %p52 = por %p50, %p51
    %p53 = scmp.ne.s32.totalorder %s44, %s45
    %p54 = scmp.eq.s32.totalorder %s13, 0
    %p55 = por %p53, %p54
    %p56 = scmp.ne.s32.totalorder %s44, %s45
    %p57 = scmp.eq.s32.totalorder %s14, 2
    %p58 = por %p56, %p57
    %p60 = scmp.ne.s32.totalorder %s45, %s59
    %p61 = scmp.eq.s32.totalorder %s14, 0
    %p62 = por %p60, %p61
    %s63 = ssub.s32 %s8, %s15
    %p64 = scmp.eq.s32.totalorder %s63, 0
    %s66 = sadd.s32 %s65, 1
    %s67 = scalar_select %p64, %s65, %s66
    %p70 = pneg %p64
    %p71 = scmp.eq.s32.totalorder %s8, 2
    %p72 = por %p70, %p71
    %p73 = scmp.ne.s32.totalorder %s65, %s68
    %p74 = scmp.eq.s32.totalorder %s8, 0
    %p75 = por %p73, %p74
    %p76 = scmp.ne.s32.totalorder %s65, %s68
    %p77 = scmp.eq.s32.totalorder %s13, 2
    %p78 = por %p76, %p77
    %p79 = scmp.ne.s32.totalorder %s68, %s69
    %p80 = scmp.eq.s32.totalorder %s13, 0
    %p81 = por %p79, %p80
    %p82 = scmp.ne.s32.totalorder %s68, %s69
    %p83 = scmp.eq.s32.totalorder %s14, 2
    %p84 = por %p82, %p83
    %p86 = scmp.ne.s32.totalorder %s69, %s85
    %p87 = scmp.eq.s32.totalorder %s14, 0
    %p88 = por %p86, %p87
    %p89 = scmp.le.s32.totalorder 1, %s8
    %p90 = scmp.lt.s32.totalorder %s8, 4
    %p91 = pnand %p89, %p90
    %p92 = pneg %p91
    // Predicated region
    $region9: #{gcn_forward.4} parent=5 // pred_check
      _
    $region10: #{gcn_forward.4} parent=5 // pred_check_branch
      %94 = sbr.rel (%p91) target = $region12
    $region11: #{gcn_forward.4} parent=5 // pred_region
      %s95 = ssub.s32 %s8, 1
      // Predicated region
      $region13: #{gcn_forward.4} parent=11 // pred_check
        %p96 = pneg %p55
      $region14: #{gcn_forward.4} parent=11 // pred_check_branch
        %98 = sbr.rel (%p96) target = $region16
      $region15: #{gcn_forward.4} parent=11 // pred_region
        _
      $region16: #{gcn_forward.4} parent=11 // pred_fallthru
        _
    $region12: #{gcn_forward.4} parent=5 // pred_fallthru
      _
    %p99 = scmp.lt.s32.totalorder %s8, 3
    // Predicated region
    $region17: #{gcn_forward.4} parent=5 // pred_check
      %p100 = pneg %p99
    $region18: #{gcn_forward.4} parent=5 // pred_check_branch
      %102 = sbr.rel (%p100) target = $region20
    $region19: #{gcn_forward.4} parent=5 // pred_region
      // Predicated region
      $region21: #{gcn_forward.4} parent=19 // pred_check
        %p103 = pneg %p28
      $region22: #{gcn_forward.4} parent=19 // pred_check_branch
        %105 = sbr.rel (%p103) target = $region24
      $region23: #{gcn_forward.4} parent=19 // pred_region
        %s106 = smul.u32 16, %s8
        %p107 = scmp.lt.s32.totalorder %s106, 47
        %s108 = scalar_select %p107, %s106, 47
        %s109 = smul.addr %s108, 4
        %s110 = scalar_lea.vmem %s0, %s109
        %s111 = smul.u32 16, %s8
      $region24: #{gcn_forward.4} parent=19 // pred_fallthru
        _
    $region20: #{gcn_forward.4} parent=5 // pred_fallthru
      _
    %p112 = scmp.le.s32.totalorder 1, %s8
    %p113 = scmp.lt.s32.totalorder %s8, 4
    %p114 = pnand %p112, %p113
    %p115 = pneg %p114
    // Predicated region
    $region25: #{gcn_forward.4} parent=5 // pred_check
      _
    $region26: #{gcn_forward.4} parent=5 // pred_check_branch
      %117 = sbr.rel (%p114) target = $region28
    $region27: #{gcn_forward.4} parent=5 // pred_region
      %s118 = ssub.s32 %s8, 1
      %s119 = smul.u32 16, %s13
      %p120 = scmp.lt.s32.totalorder %s119, 47
      %s121 = scalar_select %p120, %s119, 47
      %s122 = smul.addr %s121, 4
      %s123 = scalar_lea.vmem %s0, %s122
      %p124 = pneg %p34
      %p125 = pneg %p31
      %p126 = pneg %p55
      %p127 = pneg %p52
      %p128 = pneg %p81
      %p129 = pneg %p78
      %s130 = smul.u32 16, %s13
      %p131 = scmp.lt.s32.totalorder %s130, 47
      %s132 = scalar_select %p131, %s130, 47
      %s133 = smul.addr %s132, 4
      %s134 = scalar_lea.vmem %s2, %s133
      %s135 = smul.u32 16, %s13
      %p136 = scmp.lt.s32.totalorder %s135, 47
      %s137 = scalar_select %p136, %s135, 47
      %s138 = smul.addr %s137, 4
      %s139 = scalar_lea.vmem %s0, %s138
      %s140 = smul.u32 16, %s13
      %s141 = smul.u32 16, %s13
      %p142 = scmp.lt.s32.totalorder %s141, 47
      %s143 = scalar_select %p142, %s141, 47
      %s144 = smul.addr %s143, 4
      %s145 = scalar_lea.vmem %s2, %s144
      %s146 = smul.u32 16, %s13
      %v148 = vld [vmem:[%s139] sm:$0xf]
      %v149 = vld [vmem:[%s139 + $0x4] sm:$0xf]
      %v150 = vld [vmem:[%s139 + $0x8] sm:$0xf]
      %v151 = vld [vmem:[%s139 + $0xc] sm:$0xf]
      %v152 = vld [vmem:[%s139 + $0x10] sm:$0xf]
      %v153 = vld [vmem:[%s139 + $0x14] sm:$0xf]
      %v154 = vld [vmem:[%s139 + $0x18] sm:$0xf]
      %v155 = vld [vmem:[%s139 + $0x1c] sm:$0xf]
      %v156 = vld [vmem:[%s139 + $0x20] sm:$0xf]
      %v157 = vld [vmem:[%s139 + $0x24] sm:$0xf]
      %v158 = vld [vmem:[%s139 + $0x28] sm:$0xf]
      %v159 = vld [vmem:[%s139 + $0x2c] sm:$0xf]
      %v160 = vld [vmem:[%s139 + $0x30] sm:$0xf]
      %v161 = vld [vmem:[%s139 + $0x34] sm:$0xf]
      %v162 = vld [vmem:[%s139 + $0x38] sm:$0xf]
      %v163 = vld [vmem:[%s139 + $0x3c] sm:$0xf]
      %v164 = vld [vmem:[%s1] sm:$0xf]
      %v165 = vld [vmem:[%s1 + $0x4] sm:$0xf]
      %v166 = vld [vmem:[%s1 + $0x8] sm:$0xf]
      %v167 = vld [vmem:[%s1 + $0xc] sm:$0xf]
      %v168 = vld [vmem:[%s1 + $0x10] sm:$0xf]
      %v169 = vld [vmem:[%s1 + $0x14] sm:$0xf]
      %v186 = vunpack.c.l.b16 %v148
      %v187 = vunpack.c.l.b16 %v149
      %v188 = vunpack.c.l.b16 %v150
      %v189 = vunpack.c.l.b16 %v151
      %v190 = vunpack.c.l.b16 %v152
      %v191 = vunpack.c.l.b16 %v153
      %v192 = vunpack.c.l.b16 %v154
      %v193 = vunpack.c.l.b16 %v155
      %v194 = vunpack.c.l.b16 %v156
      %v195 = vunpack.c.l.b16 %v157
      %v196 = vunpack.c.l.b16 %v158
      %v197 = vunpack.c.l.b16 %v159
      %v198 = vunpack.c.l.b16 %v160
      %v199 = vunpack.c.l.b16 %v161
      %v200 = vunpack.c.l.b16 %v162
      %v201 = vunpack.c.l.b16 %v163
      %v202 = vpack.c.b16 %v187, %v186
      %v203 = vpack.c.b16 %v189, %v188
      %v204 = vpack.c.b16 %v191, %v190
      %v205 = vpack.c.b16 %v193, %v192
      %v206 = vpack.c.b16 %v195, %v194
      %v207 = vpack.c.b16 %v197, %v196
      %v208 = vpack.c.b16 %v199, %v198
      %v209 = vpack.c.b16 %v201, %v200
      %v216 = vunpack.c.l.b16 %v164
      %v217 = vunpack.c.l.b16 %v165
      %v218 = vunpack.c.l.b16 %v166
      %v219 = vunpack.c.l.b16 %v167
      %v220 = vunpack.c.l.b16 %v168
      %v221 = vunpack.c.l.b16 %v169
      %v222 = vpack.c.b16 %v217, %v216
      %v223 = vpack.c.b16 %v219, %v218
      %v224 = vpack.c.b16 %v221, %v220
      %vm228 = vcmask 392192
      %v230 = vsel %vm228, %v202, 0
      %v233 = vsel %vm228, %v203, 0
      %v236 = vsel %vm228, %v204, 0
      %v239 = vsel %vm228, %v205, 0
      %v242 = vsel %vm228, %v206, 0
      %v245 = vsel %vm228, %v207, 0
      %v248 = vsel %vm228, %v208, 0
      %v251 = vsel %vm228, %v209, 0
      %253 = vmatpush.bf16.msra.mxu0 0
      %254 = vmatpush.bf16.msra.mxu0 0
      %255 = vmatpush.bf16.msra.mxu0 0
      %256 = vmatpush.bf16.msra.mxu0 0
      %257 = vmatpush.bf16.msra.mxu0 0
      %258 = vmatpush.bf16.msra.mxu0 %v224
      %259 = vmatpush.bf16.msra.mxu0 %v223
      %260 = vmatpush.bf16.msra.mxu0 %v222
      %261 = vmatmul.bf16.gmra.mxu0 %v230
      %v262 = vpop.f32.mrf.mxu0
      %v263 = vadd.f32 0.0, %v262
      %v264 = vpop.f32.mrf.mxu0
      %v265 = vadd.f32 0.0, %v264
      %266 = vmatmul.bf16.gmra.mxu0 %v233
      %v267 = vpop.f32.mrf.mxu0
      %v268 = vadd.f32 0.0, %v267
      %v269 = vpop.f32.mrf.mxu0
      %v270 = vadd.f32 0.0, %v269
      %271 = vmatmul.bf16.gmra.mxu0 %v236
      %v272 = vpop.f32.mrf.mxu0
      %v273 = vadd.f32 0.0, %v272
      %v274 = vpop.f32.mrf.mxu0
      %v275 = vadd.f32 0.0, %v274
      %276 = vmatmul.bf16.gmra.mxu0 %v239
      %v277 = vpop.f32.mrf.mxu0
      %v278 = vadd.f32 0.0, %v277
      %v279 = vpop.f32.mrf.mxu0
      %v280 = vadd.f32 0.0, %v279
      %281 = vmatmul.bf16.gmra.mxu0 %v242
      %v282 = vpop.f32.mrf.mxu0
      %v283 = vadd.f32 0.0, %v282
      %v284 = vpop.f32.mrf.mxu0
      %v285 = vadd.f32 0.0, %v284
      %286 = vmatmul.bf16.gmra.mxu0 %v245
      %v287 = vpop.f32.mrf.mxu0
      %v288 = vadd.f32 0.0, %v287
      %v289 = vpop.f32.mrf.mxu0
      %v290 = vadd.f32 0.0, %v289
      %291 = vmatmul.bf16.gmra.mxu0 %v248
      %v292 = vpop.f32.mrf.mxu0
      %v293 = vadd.f32 0.0, %v292
      %v294 = vpop.f32.mrf.mxu0
      %v295 = vadd.f32 0.0, %v294
      %296 = vmatmul.bf16.gmra.mxu0 %v251
      %v297 = vpop.f32.mrf.mxu0
      %v298 = vadd.f32 0.0, %v297
      %v299 = vpop.f32.mrf.mxu0
      %v300 = vadd.f32 0.0, %v299
      %301 = vdwg.mxu0
      %v302 = vpack.c.bf16 %v263, %v263
      %v303 = vpack.c.bf16 %v265, %v265
      %v304 = vpack.c.bf16 %v268, %v268
      %v305 = vpack.c.bf16 %v270, %v270
      %v306 = vpack.c.bf16 %v273, %v273
      %v307 = vpack.c.bf16 %v275, %v275
      %v308 = vpack.c.bf16 %v278, %v278
      %v309 = vpack.c.bf16 %v280, %v280
      %v310 = vpack.c.bf16 %v283, %v283
      %v311 = vpack.c.bf16 %v285, %v285
      %v312 = vpack.c.bf16 %v288, %v288
      %v313 = vpack.c.bf16 %v290, %v290
      %v314 = vpack.c.bf16 %v293, %v293
      %v315 = vpack.c.bf16 %v295, %v295
      %v316 = vpack.c.bf16 %v298, %v298
      %v317 = vpack.c.bf16 %v300, %v300
      %318 = vst [vmem:[%s145] sm:$0xf] %v302
      %319 = vst [vmem:[%s145 + $0x4] sm:$0xf] %v303
      %320 = vst [vmem:[%s145 + $0x8] sm:$0xf] %v304
      %321 = vst [vmem:[%s145 + $0xc] sm:$0xf] %v305
      %322 = vst [vmem:[%s145 + $0x10] sm:$0xf] %v306
      %323 = vst [vmem:[%s145 + $0x14] sm:$0xf] %v307
      %324 = vst [vmem:[%s145 + $0x18] sm:$0xf] %v308
      %325 = vst [vmem:[%s145 + $0x1c] sm:$0xf] %v309
      %326 = vst [vmem:[%s145 + $0x20] sm:$0xf] %v310
      %327 = vst [vmem:[%s145 + $0x24] sm:$0xf] %v311
      %328 = vst [vmem:[%s145 + $0x28] sm:$0xf] %v312
      %329 = vst [vmem:[%s145 + $0x2c] sm:$0xf] %v313
      %330 = vst [vmem:[%s145 + $0x30] sm:$0xf] %v314
      %331 = vst [vmem:[%s145 + $0x34] sm:$0xf] %v315
      %332 = vst [vmem:[%s145 + $0x38] sm:$0xf] %v316
      %333 = vst [vmem:[%s145 + $0x3c] sm:$0xf] %v317
      %s334 = smul.u32 16, %s13
      %p335 = scmp.lt.s32.totalorder %s334, 47
      %s336 = scalar_select %p335, %s334, 47
      %s337 = smul.addr %s336, 4
      %s338 = scalar_lea.vmem %s2, %s337
      // Predicated region
      $region29: #{gcn_forward.4} parent=27 // pred_check
        %p339 = pneg %p78
      $region30: #{gcn_forward.4} parent=27 // pred_check_branch
        %341 = sbr.rel (%p339) target = $region32
      $region31: #{gcn_forward.4} parent=27 // pred_region
        %s342 = smul.u32 16, %s13
      $region32: #{gcn_forward.4} parent=27 // pred_fallthru
        _
    $region28: #{gcn_forward.4} parent=5 // pred_fallthru
      _
    %p343 = scmp.le.s32.totalorder 2, %s8
    // Predicated region
    $region33: #{gcn_forward.4} parent=5 // pred_check
      %p344 = pneg %p343
    $region34: #{gcn_forward.4} parent=5 // pred_check_branch
      %346 = sbr.rel (%p344) target = $region36
    $region35: #{gcn_forward.4} parent=5 // pred_region
      %s347 = ssub.s32 %s8, 2
      // Predicated region
      $region37: #{gcn_forward.4} parent=35 // pred_check
        %p348 = pneg %p84
      $region38: #{gcn_forward.4} parent=35 // pred_check_branch
        %350 = sbr.rel (%p348) target = $region40
      $region39: #{gcn_forward.4} parent=35 // pred_region
        %s351 = smul.u32 16, %s14
        %p352 = scmp.lt.s32.totalorder %s351, 47
        %s353 = scalar_select %p352, %s351, 47
        %s354 = smul.addr %s353, 4
        %s355 = scalar_lea.vmem %s2, %s354
      $region40: #{gcn_forward.4} parent=35 // pred_fallthru
        _
    $region36: #{gcn_forward.4} parent=5 // pred_fallthru
      _
  $region6: #{gcn_forward.4} parent=0 // loop_footer
    %s12 = sadd.s32 1, %s8
  $region7: #{gcn_forward.4} parent=0 // loop_footer_branch
    %7 = sbr.rel target = $region3
  $region8: #{gcn_forward.4} parent=0 // loop_exit
    _

// kernel: gcn_forward.6
$region0: #{gcn_forward.6}
  #allocation0 [shape = 'u32[]', space=smem, size = 0x4, offset = 0x4, fixed_abs, tag = 'smem constant byte address 0x4 - core index']
  #allocation1 [shape = 'u32[72,128]{1,0:T(1,128)}', space=vmem, size = 0x9000, scoped, tag = 'internal scratch']
  %s0 = inlined_call_operand.vmem [shape: bf16[384,128], index: 0, kind: input, shape index: {}]
  %s1 = inlined_call_operand.vmem [shape: bf16[128,128], index: 1, kind: input, shape index: {}]
  %s2 = inlined_call_operand.vmem [shape: bf16[384,128], index: 2, kind: output, shape index: {}]
  %s3 = sld [smem:[#allocation0]]
  $region41: #{gcn_forward.6} parent=0
    _
  %s5 = ssub.s32 1, %s3
  %s6 = scalar_select 0, %s5, %s3
  loop: start=0, step=1, limit=5
  $region2: #{gcn_forward.6} parent=0 // loop_pre_header
    _
  $region3: #{gcn_forward.6} parent=0 // loop_header
    %s8 = sphi 0, %s12
    %p9 = scmp.ge.s32.totalorder %s8, 5
    %s18 = sphi 0, %s20
    %s21 = sphi 0, %s18
    %s22 = sphi 0, %s21
    %s38 = sphi 0, %s22
    %s42 = sphi 0, %s42
    %s44 = sphi 0, %s42
    %s45 = sphi 0, %s44
    %s59 = sphi 0, %s45
    %s65 = sphi 0, %s67
    %s68 = sphi 0, %s65
    %s69 = sphi 0, %s68
    %s85 = sphi 0, %s69
  $region4: #{gcn_forward.6} parent=0 // loop_header_branch
    %11 = sbr.rel (%p9) target = $region8
  $region5: #{gcn_forward.6} parent=0 // loop_body
    %s13 = ssub.s32 %s8, 1
    %s14 = ssub.s32 %s8, 2
    %s15 = sadd.s32 %s8, 1
    %s16 = ssub.s32 %s8, %s15
    %p17 = scmp.eq.s32.totalorder %s16, 0
    %s19 = sadd.s32 %s18, 1
    %s20 = scalar_select %p17, %s18, %s19
    %p23 = pneg %p17
    %p24 = scmp.eq.s32.totalorder %s8, 2
    %p25 = por %p23, %p24
    %p26 = scmp.ne.s32.totalorder %s18, %s21
    %p27 = scmp.eq.s32.totalorder %s8, 0
    %p28 = por %p26, %p27
    %p29 = scmp.ne.s32.totalorder %s18, %s21
    %p30 = scmp.eq.s32.totalorder %s13, 2
    %p31 = por %p29, %p30
    %p32 = scmp.ne.s32.totalorder %s21, %s22
    %p33 = scmp.eq.s32.totalorder %s13, 0
    %p34 = por %p32, %p33
    %p35 = scmp.ne.s32.totalorder %s21, %s22
    %p36 = scmp.eq.s32.totalorder %s14, 2
    %p37 = por %p35, %p36
    %p39 = scmp.ne.s32.totalorder %s22, %s38
    %p40 = scmp.eq.s32.totalorder %s14, 0
    %p41 = por %p39, %p40
    %s43 = sadd.s32 %s42, 1
    %p46 = scmp.eq.s32.totalorder %s8, 2
    %p47 = scmp.ne.s32.totalorder %s42, %s44
    %p48 = scmp.eq.s32.totalorder %s8, 0
    %p49 = por %p47, %p48
    %p50 = scmp.ne.s32.totalorder %s42, %s44
    %p51 = scmp.eq.s32.totalorder %s13, 2
    %p52 = por %p50, %p51
    %p53 = scmp.ne.s32.totalorder %s44, %s45
    %p54 = scmp.eq.s32.totalorder %s13, 0
    %p55 = por %p53, %p54
    %p56 = scmp.ne.s32.totalorder %s44, %s45
    %p57 = scmp.eq.s32.totalorder %s14, 2
    %p58 = por %p56, %p57
    %p60 = scmp.ne.s32.totalorder %s45, %s59
    %p61 = scmp.eq.s32.totalorder %s14, 0
    %p62 = por %p60, %p61
    %s63 = ssub.s32 %s8, %s15
    %p64 = scmp.eq.s32.totalorder %s63, 0
    %s66 = sadd.s32 %s65, 1
    %s67 = scalar_select %p64, %s65, %s66
    %p70 = pneg %p64
    %p71 = scmp.eq.s32.totalorder %s8, 2
    %p72 = por %p70, %p71
    %p73 = scmp.ne.s32.totalorder %s65, %s68
    %p74 = scmp.eq.s32.totalorder %s8, 0
    %p75 = por %p73, %p74
    %p76 = scmp.ne.s32.totalorder %s65, %s68
    %p77 = scmp.eq.s32.totalorder %s13, 2
    %p78 = por %p76, %p77
    %p79 = scmp.ne.s32.totalorder %s68, %s69
    %p80 = scmp.eq.s32.totalorder %s13, 0
    %p81 = por %p79, %p80
    %p82 = scmp.ne.s32.totalorder %s68, %s69
    %p83 = scmp.eq.s32.totalorder %s14, 2
    %p84 = por %p82, %p83
    %p86 = scmp.ne.s32.totalorder %s69, %s85
    %p87 = scmp.eq.s32.totalorder %s14, 0
    %p88 = por %p86, %p87
    %p89 = scmp.le.s32.totalorder 1, %s8
    %p90 = scmp.lt.s32.totalorder %s8, 4
    %p91 = pnand %p89, %p90
    %p92 = pneg %p91
    // Predicated region
    $region9: #{gcn_forward.6} parent=5 // pred_check
      _
    $region10: #{gcn_forward.6} parent=5 // pred_check_branch
      %94 = sbr.rel (%p91) target = $region12
    $region11: #{gcn_forward.6} parent=5 // pred_region
      %s95 = ssub.s32 %s8, 1
      // Predicated region
      $region13: #{gcn_forward.6} parent=11 // pred_check
        %p96 = pneg %p55
      $region14: #{gcn_forward.6} parent=11 // pred_check_branch
        %98 = sbr.rel (%p96) target = $region16
      $region15: #{gcn_forward.6} parent=11 // pred_region
        _
      $region16: #{gcn_forward.6} parent=11 // pred_fallthru
        _
    $region12: #{gcn_forward.6} parent=5 // pred_fallthru
      _
    %p99 = scmp.lt.s32.totalorder %s8, 3
    // Predicated region
    $region17: #{gcn_forward.6} parent=5 // pred_check
      %p100 = pneg %p99
    $region18: #{gcn_forward.6} parent=5 // pred_check_branch
      %102 = sbr.rel (%p100) target = $region20
    $region19: #{gcn_forward.6} parent=5 // pred_region
      // Predicated region
      $region21: #{gcn_forward.6} parent=19 // pred_check
        %p103 = pneg %p28
      $region22: #{gcn_forward.6} parent=19 // pred_check_branch
        %105 = sbr.rel (%p103) target = $region24
      $region23: #{gcn_forward.6} parent=19 // pred_region
        %s106 = smul.u32 16, %s8
        %p107 = scmp.lt.s32.totalorder %s106, 47
        %s108 = scalar_select %p107, %s106, 47
        %s109 = smul.addr %s108, 4
        %s110 = scalar_lea.vmem %s0, %s109
        %s111 = smul.u32 16, %s8
      $region24: #{gcn_forward.6} parent=19 // pred_fallthru
        _
    $region20: #{gcn_forward.6} parent=5 // pred_fallthru
      _
    %p112 = scmp.le.s32.totalorder 1, %s8
    %p113 = scmp.lt.s32.totalorder %s8, 4
    %p114 = pnand %p112, %p113
    %p115 = pneg %p114
    // Predicated region
    $region25: #{gcn_forward.6} parent=5 // pred_check
      _
    $region26: #{gcn_forward.6} parent=5 // pred_check_branch
      %117 = sbr.rel (%p114) target = $region28
    $region27: #{gcn_forward.6} parent=5 // pred_region
      %s118 = ssub.s32 %s8, 1
      %s119 = smul.u32 16, %s13
      %p120 = scmp.lt.s32.totalorder %s119, 47
      %s121 = scalar_select %p120, %s119, 47
      %s122 = smul.addr %s121, 4
      %s123 = scalar_lea.vmem %s0, %s122
      %p124 = pneg %p34
      %p125 = pneg %p31
      %p126 = pneg %p55
      %p127 = pneg %p52
      %p128 = pneg %p81
      %p129 = pneg %p78
      %s130 = smul.u32 16, %s13
      %p131 = scmp.lt.s32.totalorder %s130, 47
      %s132 = scalar_select %p131, %s130, 47
      %s133 = smul.addr %s132, 4
      %s134 = scalar_lea.vmem %s2, %s133
      %s135 = smul.u32 16, %s13
      %p136 = scmp.lt.s32.totalorder %s135, 47
      %s137 = scalar_select %p136, %s135, 47
      %s138 = smul.addr %s137, 4
      %s139 = scalar_lea.vmem %s0, %s138
      %s140 = smul.u32 16, %s13
      %s141 = smul.u32 16, %s13
      %p142 = scmp.lt.s32.totalorder %s141, 47
      %s143 = scalar_select %p142, %s141, 47
      %s144 = smul.addr %s143, 4
      %s145 = scalar_lea.vmem %s2, %s144
      %s146 = smul.u32 16, %s13
      %v147 = vld [vmem:[%s139] sm:$0xf]
      %v148 = vld [vmem:[%s139 + $0x4] sm:$0xf]
      %v149 = vld [vmem:[%s139 + $0x8] sm:$0xf]
      %v150 = vld [vmem:[%s139 + $0xc] sm:$0xf]
      %v151 = vld [vmem:[%s139 + $0x10] sm:$0xf]
      %v152 = vld [vmem:[%s139 + $0x14] sm:$0xf]
      %v153 = vld [vmem:[%s139 + $0x18] sm:$0xf]
      %v154 = vld [vmem:[%s139 + $0x1c] sm:$0xf]
      %v155 = vld [vmem:[%s139 + $0x20] sm:$0xf]
      %v156 = vld [vmem:[%s139 + $0x24] sm:$0xf]
      %v157 = vld [vmem:[%s139 + $0x28] sm:$0xf]
      %v158 = vld [vmem:[%s139 + $0x2c] sm:$0xf]
      %v159 = vld [vmem:[%s139 + $0x30] sm:$0xf]
      %v160 = vld [vmem:[%s139 + $0x34] sm:$0xf]
      %v161 = vld [vmem:[%s139 + $0x38] sm:$0xf]
      %v162 = vld [vmem:[%s139 + $0x3c] sm:$0xf]
      %v163 = vld [vmem:[%s1] sm:$0xf]
      %v164 = vld [vmem:[%s1 + $0x4] sm:$0xf]
      %v165 = vld [vmem:[%s1 + $0x8] sm:$0xf]
      %v166 = vld [vmem:[%s1 + $0xc] sm:$0xf]
      %v167 = vld [vmem:[%s1 + $0x10] sm:$0xf]
      %v168 = vld [vmem:[%s1 + $0x14] sm:$0xf]
      %v169 = vld [vmem:[%s1 + $0x18] sm:$0xf]
      %v170 = vld [vmem:[%s1 + $0x1c] sm:$0xf]
      %v171 = vld [vmem:[%s1 + $0x20] sm:$0xf]
      %v172 = vld [vmem:[%s1 + $0x24] sm:$0xf]
      %v173 = vld [vmem:[%s1 + $0x28] sm:$0xf]
      %v174 = vld [vmem:[%s1 + $0x2c] sm:$0xf]
      %v175 = vld [vmem:[%s1 + $0x30] sm:$0xf]
      %v176 = vld [vmem:[%s1 + $0x34] sm:$0xf]
      %v177 = vld [vmem:[%s1 + $0x38] sm:$0xf]
      %v178 = vld [vmem:[%s1 + $0x3c] sm:$0xf]
      %v195 = vunpack.c.l.b16 %v147
      %v196 = vunpack.c.l.b16 %v148
      %v197 = vunpack.c.l.b16 %v149
      %v198 = vunpack.c.l.b16 %v150
      %v199 = vunpack.c.l.b16 %v151
      %v200 = vunpack.c.l.b16 %v152
      %v201 = vunpack.c.l.b16 %v153
      %v202 = vunpack.c.l.b16 %v154
      %v203 = vunpack.c.l.b16 %v155
      %v204 = vunpack.c.l.b16 %v156
      %v205 = vunpack.c.l.b16 %v157
      %v206 = vunpack.c.l.b16 %v158
      %v207 = vunpack.c.l.b16 %v159
      %v208 = vunpack.c.l.b16 %v160
      %v209 = vunpack.c.l.b16 %v161
      %v210 = vunpack.c.l.b16 %v162
      %v211 = vpack.c.b16 %v196, %v195
      %v212 = vpack.c.b16 %v198, %v197
      %v213 = vpack.c.b16 %v200, %v199
      %v214 = vpack.c.b16 %v202, %v201
      %v215 = vpack.c.b16 %v204, %v203
      %v216 = vpack.c.b16 %v206, %v205
      %v217 = vpack.c.b16 %v208, %v207
      %v218 = vpack.c.b16 %v210, %v209
      %v243 = vunpack.c.l.b16 %v163
      %v244 = vunpack.c.l.b16 %v164
      %v245 = vunpack.c.l.b16 %v165
      %v246 = vunpack.c.l.b16 %v166
      %v247 = vunpack.c.l.b16 %v167
      %v248 = vunpack.c.l.b16 %v168
      %v249 = vunpack.c.l.b16 %v169
      %v250 = vunpack.c.l.b16 %v170
      %v251 = vunpack.c.l.b16 %v171
      %v252 = vunpack.c.l.b16 %v172
      %v253 = vunpack.c.l.b16 %v173
      %v254 = vunpack.c.l.b16 %v174
      %v255 = vunpack.c.l.b16 %v175
      %v256 = vunpack.c.l.b16 %v176
      %v257 = vunpack.c.l.b16 %v177
      %v258 = vunpack.c.l.b16 %v178
      %v259 = vpack.c.b16 %v244, %v243
      %v260 = vpack.c.b16 %v246, %v245
      %v261 = vpack.c.b16 %v248, %v247
      %v262 = vpack.c.b16 %v250, %v249
      %v263 = vpack.c.b16 %v252, %v251
      %v264 = vpack.c.b16 %v254, %v253
      %v265 = vpack.c.b16 %v256, %v255
      %v266 = vpack.c.b16 %v258, %v257
      %275 = vmatpush.bf16.msra.mxu0 %v266
      %276 = vmatpush.bf16.msra.mxu0 %v265
      %277 = vmatpush.bf16.msra.mxu0 %v264
      %278 = vmatpush.bf16.msra.mxu0 %v263
      %279 = vmatpush.bf16.msra.mxu0 %v262
      %280 = vmatpush.bf16.msra.mxu0 %v261
      %281 = vmatpush.bf16.msra.mxu0 %v260
      %282 = vmatpush.bf16.msra.mxu0 %v259
      %283 = vmatmul.bf16.gmra.mxu0 %v211
      %v284 = vpop.f32.mrf.mxu0
      %v285 = vadd.f32 0.0, %v284
      %v286 = vpop.f32.mrf.mxu0
      %v287 = vadd.f32 0.0, %v286
      %288 = vmatmul.bf16.gmra.mxu0 %v212
      %v289 = vpop.f32.mrf.mxu0
      %v290 = vadd.f32 0.0, %v289
      %v291 = vpop.f32.mrf.mxu0
      %v292 = vadd.f32 0.0, %v291
      %293 = vmatmul.bf16.gmra.mxu0 %v213
      %v294 = vpop.f32.mrf.mxu0
      %v295 = vadd.f32 0.0, %v294
      %v296 = vpop.f32.mrf.mxu0
      %v297 = vadd.f32 0.0, %v296
      %298 = vmatmul.bf16.gmra.mxu0 %v214
      %v299 = vpop.f32.mrf.mxu0
      %v300 = vadd.f32 0.0, %v299
      %v301 = vpop.f32.mrf.mxu0
      %v302 = vadd.f32 0.0, %v301
      %303 = vmatmul.bf16.gmra.mxu0 %v215
      %v304 = vpop.f32.mrf.mxu0
      %v305 = vadd.f32 0.0, %v304
      %v306 = vpop.f32.mrf.mxu0
      %v307 = vadd.f32 0.0, %v306
      %308 = vmatmul.bf16.gmra.mxu0 %v216
      %v309 = vpop.f32.mrf.mxu0
      %v310 = vadd.f32 0.0, %v309
      %v311 = vpop.f32.mrf.mxu0
      %v312 = vadd.f32 0.0, %v311
      %313 = vmatmul.bf16.gmra.mxu0 %v217
      %v314 = vpop.f32.mrf.mxu0
      %v315 = vadd.f32 0.0, %v314
      %v316 = vpop.f32.mrf.mxu0
      %v317 = vadd.f32 0.0, %v316
      %318 = vmatmul.bf16.gmra.mxu0 %v218
      %v319 = vpop.f32.mrf.mxu0
      %v320 = vadd.f32 0.0, %v319
      %v321 = vpop.f32.mrf.mxu0
      %v322 = vadd.f32 0.0, %v321
      %323 = vdwg.mxu0
      %v324 = vpack.c.bf16 %v285, %v285
      %v325 = vpack.c.bf16 %v287, %v287
      %v326 = vpack.c.bf16 %v290, %v290
      %v327 = vpack.c.bf16 %v292, %v292
      %v328 = vpack.c.bf16 %v295, %v295
      %v329 = vpack.c.bf16 %v297, %v297
      %v330 = vpack.c.bf16 %v300, %v300
      %v331 = vpack.c.bf16 %v302, %v302
      %v332 = vpack.c.bf16 %v305, %v305
      %v333 = vpack.c.bf16 %v307, %v307
      %v334 = vpack.c.bf16 %v310, %v310
      %v335 = vpack.c.bf16 %v312, %v312
      %v336 = vpack.c.bf16 %v315, %v315
      %v337 = vpack.c.bf16 %v317, %v317
      %v338 = vpack.c.bf16 %v320, %v320
      %v339 = vpack.c.bf16 %v322, %v322
      %340 = vst [vmem:[%s145] sm:$0xf] %v324
      %341 = vst [vmem:[%s145 + $0x4] sm:$0xf] %v325
      %342 = vst [vmem:[%s145 + $0x8] sm:$0xf] %v326
      %343 = vst [vmem:[%s145 + $0xc] sm:$0xf] %v327
      %344 = vst [vmem:[%s145 + $0x10] sm:$0xf] %v328
      %345 = vst [vmem:[%s145 + $0x14] sm:$0xf] %v329
      %346 = vst [vmem:[%s145 + $0x18] sm:$0xf] %v330
      %347 = vst [vmem:[%s145 + $0x1c] sm:$0xf] %v331
      %348 = vst [vmem:[%s145 + $0x20] sm:$0xf] %v332
      %349 = vst [vmem:[%s145 + $0x24] sm:$0xf] %v333
      %350 = vst [vmem:[%s145 + $0x28] sm:$0xf] %v334
      %351 = vst [vmem:[%s145 + $0x2c] sm:$0xf] %v335
      %352 = vst [vmem:[%s145 + $0x30] sm:$0xf] %v336
      %353 = vst [vmem:[%s145 + $0x34] sm:$0xf] %v337
      %354 = vst [vmem:[%s145 + $0x38] sm:$0xf] %v338
      %355 = vst [vmem:[%s145 + $0x3c] sm:$0xf] %v339
      %s356 = smul.u32 16, %s13
      %p357 = scmp.lt.s32.totalorder %s356, 47
      %s358 = scalar_select %p357, %s356, 47
      %s359 = smul.addr %s358, 4
      %s360 = scalar_lea.vmem %s2, %s359
      // Predicated region
      $region29: #{gcn_forward.6} parent=27 // pred_check
        %p361 = pneg %p78
      $region30: #{gcn_forward.6} parent=27 // pred_check_branch
        %363 = sbr.rel (%p361) target = $region32
      $region31: #{gcn_forward.6} parent=27 // pred_region
        %s364 = smul.u32 16, %s13
      $region32: #{gcn_forward.6} parent=27 // pred_fallthru
        _
    $region28: #{gcn_forward.6} parent=5 // pred_fallthru
      _
    %p365 = scmp.le.s32.totalorder 2, %s8
    // Predicated region
    $region33: #{gcn_forward.6} parent=5 // pred_check
      %p366 = pneg %p365
    $region34: #{gcn_forward.6} parent=5 // pred_check_branch
      %368 = sbr.rel (%p366) target = $region36
    $region35: #{gcn_forward.6} parent=5 // pred_region
      %s369 = ssub.s32 %s8, 2
      // Predicated region
      $region37: #{gcn_forward.6} parent=35 // pred_check
        %p370 = pneg %p84
      $region38: #{gcn_forward.6} parent=35 // pred_check_branch
        %372 = sbr.rel (%p370) target = $region40
      $region39: #{gcn_forward.6} parent=35 // pred_region
        %s373 = smul.u32 16, %s14
        %p374 = scmp.lt.s32.totalorder %s373, 47
        %s375 = scalar_select %p374, %s373, 47
        %s376 = smul.addr %s375, 4
        %s377 = scalar_lea.vmem %s2, %s376
      $region40: #{gcn_forward.6} parent=35 // pred_fallthru
        _
    $region36: #{gcn_forward.6} parent=5 // pred_fallthru
      _
  $region6: #{gcn_forward.6} parent=0 // loop_footer
    %s12 = sadd.s32 1, %s8
  $region7: #{gcn_forward.6} parent=0 // loop_footer_branch
    %7 = sbr.rel target = $region3
  $region8: #{gcn_forward.6} parent=0 // loop_exit
    _

// kernel: gcn_forward.5
$region0: #{gcn_forward.5}
  #allocation0 [shape = 'u32[]', space=smem, size = 0x4, offset = 0x4, fixed_abs, tag = 'smem constant byte address 0x4 - core index']
  #allocation1 [shape = 'u32[72,128]{1,0:T(1,128)}', space=vmem, size = 0x9000, scoped, tag = 'internal scratch']
  %s0 = inlined_call_operand.vmem [shape: bf16[384,384], index: 0, kind: input, shape index: {}]
  %s1 = inlined_call_operand.vmem [shape: bf16[384,128], index: 1, kind: input, shape index: {}]
  %s2 = inlined_call_operand.vmem [shape: f32[1,128], index: 2, kind: input, shape index: {}]
  %s3 = inlined_call_operand.vmem [shape: bf16[384,128], index: 3, kind: output, shape index: {}]
  %s4 = sld [smem:[#allocation0]]
  $region45: #{gcn_forward.5} parent=0
    _
  %s6 = ssub.s32 1, %s4
  %s7 = scalar_select 0, %s6, %s4
  loop: start=0, step=1, limit=5
  $region2: #{gcn_forward.5} parent=0 // loop_pre_header
    _
  $region3: #{gcn_forward.5} parent=0 // loop_header
    %s9 = sphi 0, %s13
    %p10 = scmp.ge.s32.totalorder %s9, 5
    %s19 = sphi 0, %s21
    %s22 = sphi 0, %s19
    %s23 = sphi 0, %s22
    %s39 = sphi 0, %s23
    %s43 = sphi 0, %s43
    %s45 = sphi 0, %s43
    %s46 = sphi 0, %s45
    %s60 = sphi 0, %s46
    %s64 = sphi 0, %s64
    %s66 = sphi 0, %s64
    %s67 = sphi 0, %s66
    %s81 = sphi 0, %s67
    %s87 = sphi 0, %s89
    %s90 = sphi 0, %s87
    %s91 = sphi 0, %s90
    %s107 = sphi 0, %s91
  $region4: #{gcn_forward.5} parent=0 // loop_header_branch
    %12 = sbr.rel (%p10) target = $region8
  $region5: #{gcn_forward.5} parent=0 // loop_body
    %s14 = ssub.s32 %s9, 1
    %s15 = ssub.s32 %s9, 2
    %s16 = sadd.s32 %s9, 1
    %s17 = ssub.s32 %s9, %s16
    %p18 = scmp.eq.s32.totalorder %s17, 0
    %s20 = sadd.s32 %s19, 1
    %s21 = scalar_select %p18, %s19, %s20
    %p24 = pneg %p18
    %p25 = scmp.eq.s32.totalorder %s9, 2
    %p26 = por %p24, %p25
    %p27 = scmp.ne.s32.totalorder %s19, %s22
    %p28 = scmp.eq.s32.totalorder %s9, 0
    %p29 = por %p27, %p28
    %p30 = scmp.ne.s32.totalorder %s19, %s22
    %p31 = scmp.eq.s32.totalorder %s14, 2
    %p32 = por %p30, %p31
    %p33 = scmp.ne.s32.totalorder %s22, %s23
    %p34 = scmp.eq.s32.totalorder %s14, 0
    %p35 = por %p33, %p34
    %p36 = scmp.ne.s32.totalorder %s22, %s23
    %p37 = scmp.eq.s32.totalorder %s15, 2
    %p38 = por %p36, %p37
    %p40 = scmp.ne.s32.totalorder %s23, %s39
    %p41 = scmp.eq.s32.totalorder %s15, 0
    %p42 = por %p40, %p41
    %s44 = sadd.s32 %s43, 1
    %p47 = scmp.eq.s32.totalorder %s9, 2
    %p48 = scmp.ne.s32.totalorder %s43, %s45
    %p49 = scmp.eq.s32.totalorder %s9, 0
    %p50 = por %p48, %p49
    %p51 = scmp.ne.s32.totalorder %s43, %s45
    %p52 = scmp.eq.s32.totalorder %s14, 2
    %p53 = por %p51, %p52
    %p54 = scmp.ne.s32.totalorder %s45, %s46
    %p55 = scmp.eq.s32.totalorder %s14, 0
    %p56 = por %p54, %p55
    %p57 = scmp.ne.s32.totalorder %s45, %s46
    %p58 = scmp.eq.s32.totalorder %s15, 2
    %p59 = por %p57, %p58
    %p61 = scmp.ne.s32.totalorder %s46, %s60
    %p62 = scmp.eq.s32.totalorder %s15, 0
    %p63 = por %p61, %p62
    %s65 = sadd.s32 %s64, 1
    %p68 = scmp.eq.s32.totalorder %s9, 2
    %p69 = scmp.ne.s32.totalorder %s64, %s66
    %p70 = scmp.eq.s32.totalorder %s9, 0
    %p71 = por %p69, %p70
    %p72 = scmp.ne.s32.totalorder %s64, %s66
    %p73 = scmp.eq.s32.totalorder %s14, 2
    %p74 = por %p72, %p73
    %p75 = scmp.ne.s32.totalorder %s66, %s67
    %p76 = scmp.eq.s32.totalorder %s14, 0
    %p77 = por %p75, %p76
    %p78 = scmp.ne.s32.totalorder %s66, %s67
    %p79 = scmp.eq.s32.totalorder %s15, 2
    %p80 = por %p78, %p79
    %p82 = scmp.ne.s32.totalorder %s67, %s81
    %p83 = scmp.eq.s32.totalorder %s15, 0
    %p84 = por %p82, %p83
    %s85 = ssub.s32 %s9, %s16
    %p86 = scmp.eq.s32.totalorder %s85, 0
    %s88 = sadd.s32 %s87, 1
    %s89 = scalar_select %p86, %s87, %s88
    %p92 = pneg %p86
    %p93 = scmp.eq.s32.totalorder %s9, 2
    %p94 = por %p92, %p93
    %p95 = scmp.ne.s32.totalorder %s87, %s90
    %p96 = scmp.eq.s32.totalorder %s9, 0
    %p97 = por %p95, %p96
    %p98 = scmp.ne.s32.totalorder %s87, %s90
    %p99 = scmp.eq.s32.totalorder %s14, 2
    %p100 = por %p98, %p99
    %p101 = scmp.ne.s32.totalorder %s90, %s91
    %p102 = scmp.eq.s32.totalorder %s14, 0
    %p103 = por %p101, %p102
    %p104 = scmp.ne.s32.totalorder %s90, %s91
    %p105 = scmp.eq.s32.totalorder %s15, 2
    %p106 = por %p104, %p105
    %p108 = scmp.ne.s32.totalorder %s91, %s107
    %p109 = scmp.eq.s32.totalorder %s15, 0
    %p110 = por %p108, %p109
    %p111 = scmp.le.s32.totalorder 1, %s9
    %p112 = scmp.lt.s32.totalorder %s9, 4
    %p113 = pnand %p111, %p112
    %p114 = pneg %p113
    // Predicated region
    $region9: #{gcn_forward.5} parent=5 // pred_check
      _
    $region10: #{gcn_forward.5} parent=5 // pred_check_branch
      %116 = sbr.rel (%p113) target = $region12
    $region11: #{gcn_forward.5} parent=5 // pred_region
      %s117 = ssub.s32 %s9, 1
      // Predicated region
      $region13: #{gcn_forward.5} parent=11 // pred_check
        %p118 = pneg %p56
      $region14: #{gcn_forward.5} parent=11 // pred_check_branch
        %120 = sbr.rel (%p118) target = $region16
      $region15: #{gcn_forward.5} parent=11 // pred_region
        _
      $region16: #{gcn_forward.5} parent=11 // pred_fallthru
        _
      // Predicated region
      $region17: #{gcn_forward.5} parent=11 // pred_check
        %p121 = pneg %p77
      $region18: #{gcn_forward.5} parent=11 // pred_check_branch
        %123 = sbr.rel (%p121) target = $region20
      $region19: #{gcn_forward.5} parent=11 // pred_region
        _
      $region20: #{gcn_forward.5} parent=11 // pred_fallthru
        _
    $region12: #{gcn_forward.5} parent=5 // pred_fallthru
      _
    %p124 = scmp.lt.s32.totalorder %s9, 3
    // Predicated region
    $region21: #{gcn_forward.5} parent=5 // pred_check
      %p125 = pneg %p124
    $region22: #{gcn_forward.5} parent=5 // pred_check_branch
      %127 = sbr.rel (%p125) target = $region24
    $region23: #{gcn_forward.5} parent=5 // pred_region
      // Predicated region
      $region25: #{gcn_forward.5} parent=23 // pred_check
        %p128 = pneg %p29
      $region26: #{gcn_forward.5} parent=23 // pred_check_branch
        %130 = sbr.rel (%p128) target = $region28
      $region27: #{gcn_forward.5} parent=23 // pred_region
        %s131 = smul.u32 16, %s9
        %p132 = scmp.lt.s32.totalorder %s131, 47
        %s133 = scalar_select %p132, %s131, 47
        %s134 = smul.addr %s133, 3
        %s135 = smul.addr %s134, 4
        %s136 = scalar_lea.vmem %s0, %s135
        %s137 = smul.u32 16, %s9
      $region28: #{gcn_forward.5} parent=23 // pred_fallthru
        _
    $region24: #{gcn_forward.5} parent=5 // pred_fallthru
      _
    %p138 = scmp.le.s32.totalorder 1, %s9
    %p139 = scmp.lt.s32.totalorder %s9, 4
    %p140 = pnand %p138, %p139
    %p141 = pneg %p140
    // Predicated region
    $region29: #{gcn_forward.5} parent=5 // pred_check
      _
    $region30: #{gcn_forward.5} parent=5 // pred_check_branch
      %143 = sbr.rel (%p140) target = $region32
    $region31: #{gcn_forward.5} parent=5 // pred_region
      %s144 = ssub.s32 %s9, 1
      %s145 = smul.u32 16, %s14
      %p146 = scmp.lt.s32.totalorder %s145, 47
      %s147 = scalar_select %p146, %s145, 47
      %s148 = smul.addr %s147, 3
      %s149 = smul.addr %s148, 4
      %s150 = scalar_lea.vmem %s0, %s149
      %p151 = pneg %p35
      %p152 = pneg %p32
      %p153 = pneg %p56
      %p154 = pneg %p53
      %p155 = pneg %p77
      %p156 = pneg %p74
      %p157 = pneg %p103
      %p158 = pneg %p100
      %s159 = smul.u32 16, %s14
      %p160 = scmp.lt.s32.totalorder %s159, 47
      %s161 = scalar_select %p160, %s159, 47
      %s162 = smul.addr %s161, 4
      %s163 = scalar_lea.vmem %s3, %s162
      %s164 = smul.u32 16, %s14
      %p165 = scmp.lt.s32.totalorder %s164, 47
      %s166 = scalar_select %p165, %s164, 47
      %s167 = smul.addr %s166, 3
      %s168 = smul.addr %s167, 4
      %s169 = scalar_lea.vmem %s0, %s168
      %s170 = smul.u32 16, %s14
      %s171 = smul.u32 16, %s14
      %p172 = scmp.lt.s32.totalorder %s171, 47
      %s173 = scalar_select %p172, %s171, 47
      %s174 = smul.addr %s173, 4
      %s175 = scalar_lea.vmem %s3, %s174
      %s176 = smul.u32 16, %s14
      %v177 = vld [vmem:[%s169] sm:$0xff]
      %v178 = vld [vmem:[%s169 + $0x8] sm:$0xf]
      %v179 = vld [vmem:[%s169 + $0xc] sm:$0xff]
      %v180 = vld [vmem:[%s169 + $0x14] sm:$0xf]
      %v181 = vld [vmem:[%s169 + $0x18] sm:$0xff]
      %v182 = vld [vmem:[%s169 + $0x20] sm:$0xf]
      %v183 = vld [vmem:[%s169 + $0x24] sm:$0xff]
      %v184 = vld [vmem:[%s169 + $0x2c] sm:$0xf]
      %v185 = vld [vmem:[%s169 + $0x30] sm:$0xff]
      %v186 = vld [vmem:[%s169 + $0x38] sm:$0xf]
      %v187 = vld [vmem:[%s169 + $0x3c] sm:$0xff]
      %v188 = vld [vmem:[%s169 + $0x44] sm:$0xf]
      %v189 = vld [vmem:[%s169 + $0x48] sm:$0xff]
      %v190 = vld [vmem:[%s169 + $0x50] sm:$0xf]
      %v191 = vld [vmem:[%s169 + $0x54] sm:$0xff]
      %v192 = vld [vmem:[%s169 + $0x5c] sm:$0xf]
      %v193 = vld [vmem:[%s169 + $0x60] sm:$0xff]
      %v194 = vld [vmem:[%s169 + $0x68] sm:$0xf]
      %v195 = vld [vmem:[%s169 + $0x6c] sm:$0xff]
      %v196 = vld [vmem:[%s169 + $0x74] sm:$0xf]
      %v197 = vld [vmem:[%s169 + $0x78] sm:$0xff]
      %v198 = vld [vmem:[%s169 + $0x80] sm:$0xf]
      %v199 = vld [vmem:[%s169 + $0x84] sm:$0xff]
      %v200 = vld [vmem:[%s169 + $0x8c] sm:$0xf]
      %v201 = vld [vmem:[%s169 + $0x90] sm:$0xff]
      %v202 = vld [vmem:[%s169 + $0x98] sm:$0xf]
      %v203 = vld [vmem:[%s169 + $0x9c] sm:$0xff]
      %v204 = vld [vmem:[%s169 + $0xa4] sm:$0xf]
      %v205 = vld [vmem:[%s169 + $0xa8] sm:$0xff]
      %v206 = vld [vmem:[%s169 + $0xb0] sm:$0xf]
      %v207 = vld [vmem:[%s169 + $0xb4] sm:$0xff]
      %v208 = vld [vmem:[%s169 + $0xbc] sm:$0xf]
      %v209 = vld [vmem:[%s1] sm:$0xf]
      %v210 = vld [vmem:[%s1 + $0x4] sm:$0xf]
      %v211 = vld [vmem:[%s1 + $0x8] sm:$0xf]
      %v212 = vld [vmem:[%s1 + $0xc] sm:$0xf]
      %v213 = vld [vmem:[%s1 + $0x10] sm:$0xf]
      %v214 = vld [vmem:[%s1 + $0x14] sm:$0xf]
      %v215 = vld [vmem:[%s1 + $0x18] sm:$0xf]
      %v216 = vld [vmem:[%s1 + $0x1c] sm:$0xf]
      %v217 = vld [vmem:[%s1 + $0x20] sm:$0xf]
      %v218 = vld [vmem:[%s1 + $0x24] sm:$0xf]
      %v219 = vld [vmem:[%s1 + $0x28] sm:$0xf]
      %v220 = vld [vmem:[%s1 + $0x2c] sm:$0xf]
      %v221 = vld [vmem:[%s1 + $0x30] sm:$0xf]
      %v222 = vld [vmem:[%s1 + $0x34] sm:$0xf]
      %v223 = vld [vmem:[%s1 + $0x38] sm:$0xf]
      %v224 = vld [vmem:[%s1 + $0x3c] sm:$0xf]
      %v225 = vld [vmem:[%s1 + $0x40] sm:$0xf]
      %v226 = vld [vmem:[%s1 + $0x44] sm:$0xf]
      %v227 = vld [vmem:[%s1 + $0x48] sm:$0xf]
      %v228 = vld [vmem:[%s1 + $0x4c] sm:$0xf]
      %v229 = vld [vmem:[%s1 + $0x50] sm:$0xf]
      %v230 = vld [vmem:[%s1 + $0x54] sm:$0xf]
      %v231 = vld [vmem:[%s1 + $0x58] sm:$0xf]
      %v232 = vld [vmem:[%s1 + $0x5c] sm:$0xf]
      %v233 = vld [vmem:[%s1 + $0x60] sm:$0xf]
      %v234 = vld [vmem:[%s1 + $0x64] sm:$0xf]
      %v235 = vld [vmem:[%s1 + $0x68] sm:$0xf]
      %v236 = vld [vmem:[%s1 + $0x6c] sm:$0xf]
      %v237 = vld [vmem:[%s1 + $0x70] sm:$0xf]
      %v238 = vld [vmem:[%s1 + $0x74] sm:$0xf]
      %v239 = vld [vmem:[%s1 + $0x78] sm:$0xf]
      %v240 = vld [vmem:[%s1 + $0x7c] sm:$0xf]
      %v241 = vld [vmem:[%s1 + $0x80] sm:$0xf]
      %v242 = vld [vmem:[%s1 + $0x84] sm:$0xf]
      %v243 = vld [vmem:[%s1 + $0x88] sm:$0xf]
      %v244 = vld [vmem:[%s1 + $0x8c] sm:$0xf]
      %v245 = vld [vmem:[%s1 + $0x90] sm:$0xf]
      %v246 = vld [vmem:[%s1 + $0x94] sm:$0xf]
      %v247 = vld [vmem:[%s1 + $0x98] sm:$0xf]
      %v248 = vld [vmem:[%s1 + $0x9c] sm:$0xf]
      %v249 = vld [vmem:[%s1 + $0xa0] sm:$0xf]
      %v250 = vld [vmem:[%s1 + $0xa4] sm:$0xf]
      %v251 = vld [vmem:[%s1 + $0xa8] sm:$0xf]
      %v252 = vld [vmem:[%s1 + $0xac] sm:$0xf]
      %v253 = vld [vmem:[%s1 + $0xb0] sm:$0xf]
      %v254 = vld [vmem:[%s1 + $0xb4] sm:$0xf]
      %v255 = vld [vmem:[%s1 + $0xb8] sm:$0xf]
      %v256 = vld [vmem:[%s1 + $0xbc] sm:$0xf]
      %v257 = vld [vmem:[%s2] sm:$0x1]
      %v259 = vperm.slane %v257, 0
      %v293 = vunpack.c.l.b16 %v177
      %v294 = vunpack.c.h.b16 %v177
      %v295 = vunpack.c.l.b16 %v178
      %v296 = vunpack.c.l.b16 %v179
      %v297 = vunpack.c.h.b16 %v179
      %v298 = vunpack.c.l.b16 %v180
      %v299 = vunpack.c.l.b16 %v181
      %v300 = vunpack.c.h.b16 %v181
      %v301 = vunpack.c.l.b16 %v182
      %v302 = vunpack.c.l.b16 %v183
      %v303 = vunpack.c.h.b16 %v183
      %v304 = vunpack.c.l.b16 %v184
      %v305 = vunpack.c.l.b16 %v185
      %v306 = vunpack.c.h.b16 %v185
      %v307 = vunpack.c.l.b16 %v186
      %v308 = vunpack.c.l.b16 %v187
      %v309 = vunpack.c.h.b16 %v187
      %v310 = vunpack.c.l.b16 %v188
      %v311 = vunpack.c.l.b16 %v189
      %v312 = vunpack.c.h.b16 %v189
      %v313 = vunpack.c.l.b16 %v190
      %v314 = vunpack.c.l.b16 %v191
      %v315 = vunpack.c.h.b16 %v191
      %v316 = vunpack.c.l.b16 %v192
      %v317 = vunpack.c.l.b16 %v193
      %v318 = vunpack.c.h.b16 %v193
      %v319 = vunpack.c.l.b16 %v194
      %v320 = vunpack.c.l.b16 %v195
      %v321 = vunpack.c.h.b16 %v195
      %v322 = vunpack.c.l.b16 %v196
      %v323 = vunpack.c.l.b16 %v197
      %v324 = vunpack.c.h.b16 %v197
      %v325 = vunpack.c.l.b16 %v198
      %v326 = vunpack.c.l.b16 %v199
      %v327 = vunpack.c.h.b16 %v199
      %v328 = vunpack.c.l.b16 %v200
      %v329 = vunpack.c.l.b16 %v201
      %v330 = vunpack.c.h.b16 %v201
      %v331 = vunpack.c.l.b16 %v202
      %v332 = vunpack.c.l.b16 %v203
      %v333 = vunpack.c.h.b16 %v203
      %v334 = vunpack.c.l.b16 %v204
      %v335 = vunpack.c.l.b16 %v205
      %v336 = vunpack.c.h.b16 %v205
      %v337 = vunpack.c.l.b16 %v206
      %v338 = vunpack.c.l.b16 %v207
      %v339 = vunpack.c.h.b16 %v207
      %v340 = vunpack.c.l.b16 %v208
      %v341 = vpack.c.b16 %v296, %v293
      %v342 = vpack.c.b16 %v297, %v294
      %v343 = vpack.c.b16 %v298, %v295
      %v344 = vpack.c.b16 %v302, %v299
      %v345 = vpack.c.b16 %v303, %v300
      %v346 = vpack.c.b16 %v304, %v301
      %v347 = vpack.c.b16 %v308, %v305
      %v348 = vpack.c.b16 %v309, %v306
      %v349 = vpack.c.b16 %v310, %v307
      %v350 = vpack.c.b16 %v314, %v311
      %v351 = vpack.c.b16 %v315, %v312
      %v352 = vpack.c.b16 %v316, %v313
      %v353 = vpack.c.b16 %v320, %v317
      %v354 = vpack.c.b16 %v321, %v318
      %v355 = vpack.c.b16 %v322, %v319
      %v356 = vpack.c.b16 %v326, %v323
      %v357 = vpack.c.b16 %v327, %v324
      %v358 = vpack.c.b16 %v328, %v325
      %v359 = vpack.c.b16 %v332, %v329
      %v360 = vpack.c.b16 %v333, %v330
      %v361 = vpack.c.b16 %v334, %v331
      %v362 = vpack.c.b16 %v338, %v335
      %v363 = vpack.c.b16 %v339, %v336
      %v364 = vpack.c.b16 %v340, %v337
      %v437 = vunpack.c.l.b16 %v209
      %v438 = vunpack.c.l.b16 %v210
      %v439 = vunpack.c.l.b16 %v211
      %v440 = vunpack.c.l.b16 %v212
      %v441 = vunpack.c.l.b16 %v213
      %v442 = vunpack.c.l.b16 %v214
      %v443 = vunpack.c.l.b16 %v215
      %v444 = vunpack.c.l.b16 %v216
      %v445 = vunpack.c.l.b16 %v217
      %v446 = vunpack.c.l.b16 %v218
      %v447 = vunpack.c.l.b16 %v219
      %v448 = vunpack.c.l.b16 %v220
      %v449 = vunpack.c.l.b16 %v221
      %v450 = vunpack.c.l.b16 %v222
      %v451 = vunpack.c.l.b16 %v223
      %v452 = vunpack.c.l.b16 %v224
      %v453 = vunpack.c.l.b16 %v225
      %v454 = vunpack.c.l.b16 %v226
      %v455 = vunpack.c.l.b16 %v227
      %v456 = vunpack.c.l.b16 %v228
      %v457 = vunpack.c.l.b16 %v229
      %v458 = vunpack.c.l.b16 %v230
      %v459 = vunpack.c.l.b16 %v231
      %v460 = vunpack.c.l.b16 %v232
      %v461 = vunpack.c.l.b16 %v233
      %v462 = vunpack.c.l.b16 %v234
      %v463 = vunpack.c.l.b16 %v235
      %v464 = vunpack.c.l.b16 %v236
      %v465 = vunpack.c.l.b16 %v237
      %v466 = vunpack.c.l.b16 %v238
      %v467 = vunpack.c.l.b16 %v239
      %v468 = vunpack.c.l.b16 %v240
      %v469 = vunpack.c.l.b16 %v241
      %v470 = vunpack.c.l.b16 %v242
      %v471 = vunpack.c.l.b16 %v243
      %v472 = vunpack.c.l.b16 %v244
      %v473 = vunpack.c.l.b16 %v245
      %v474 = vunpack.c.l.b16 %v246
      %v475 = vunpack.c.l.b16 %v247
      %v476 = vunpack.c.l.b16 %v248
      %v477 = vunpack.c.l.b16 %v249
      %v478 = vunpack.c.l.b16 %v250
      %v479 = vunpack.c.l.b16 %v251
      %v480 = vunpack.c.l.b16 %v252
      %v481 = vunpack.c.l.b16 %v253
      %v482 = vunpack.c.l.b16 %v254
      %v483 = vunpack.c.l.b16 %v255
      %v484 = vunpack.c.l.b16 %v256
      %v485 = vpack.c.b16 %v438, %v437
      %v486 = vpack.c.b16 %v440, %v439
      %v487 = vpack.c.b16 %v442, %v441
      %v488 = vpack.c.b16 %v444, %v443
      %v489 = vpack.c.b16 %v446, %v445
      %v490 = vpack.c.b16 %v448, %v447
      %v491 = vpack.c.b16 %v450, %v449
      %v492 = vpack.c.b16 %v452, %v451
      %v493 = vpack.c.b16 %v454, %v453
      %v494 = vpack.c.b16 %v456, %v455
      %v495 = vpack.c.b16 %v458, %v457
      %v496 = vpack.c.b16 %v460, %v459
      %v497 = vpack.c.b16 %v462, %v461
      %v498 = vpack.c.b16 %v464, %v463
      %v499 = vpack.c.b16 %v466, %v465
      %v500 = vpack.c.b16 %v468, %v467
      %v501 = vpack.c.b16 %v470, %v469
      %v502 = vpack.c.b16 %v472, %v471
      %v503 = vpack.c.b16 %v474, %v473
      %v504 = vpack.c.b16 %v476, %v475
      %v505 = vpack.c.b16 %v478, %v477
      %v506 = vpack.c.b16 %v480, %v479
      %v507 = vpack.c.b16 %v482, %v481
      %v508 = vpack.c.b16 %v484, %v483
      %533 = vmatpush.bf16.msra.mxu0 %v492
      %534 = vmatpush.bf16.msra.mxu0 %v491
      %535 = vmatpush.bf16.msra.mxu0 %v490
      %536 = vmatpush.bf16.msra.mxu0 %v489
      %537 = vmatpush.bf16.msra.mxu0 %v488
      %538 = vmatpush.bf16.msra.mxu0 %v487
      %539 = vmatpush.bf16.msra.mxu0 %v486
      %540 = vmatpush.bf16.msra.mxu0 %v485
      %541 = vmatmul.bf16.gmra.mxu0 %v341
      %v542 = vpop.f32.mrf.mxu0
      %v543 = vadd.f32 %v259, %v542
      %v544 = vpop.f32.mrf.mxu0
      %v545 = vadd.f32 %v259, %v544
      %546 = vmatmul.bf16.gmra.mxu0 %v344
      %v547 = vpop.f32.mrf.mxu0
      %v548 = vadd.f32 %v259, %v547
      %v549 = vpop.f32.mrf.mxu0
      %v550 = vadd.f32 %v259, %v549
      %551 = vmatmul.bf16.gmra.mxu0 %v347
      %v552 = vpop.f32.mrf.mxu0
      %v553 = vadd.f32 %v259, %v552
      %v554 = vpop.f32.mrf.mxu0
      %v555 = vadd.f32 %v259, %v554
      %556 = vmatmul.bf16.gmra.mxu0 %v350
      %v557 = vpop.f32.mrf.mxu0
      %v558 = vadd.f32 %v259, %v557
      %v559 = vpop.f32.mrf.mxu0
      %v560 = vadd.f32 %v259, %v559
      %561 = vmatmul.bf16.gmra.mxu0 %v353
      %v562 = vpop.f32.mrf.mxu0
      %v563 = vadd.f32 %v259, %v562
      %v564 = vpop.f32.mrf.mxu0
      %v565 = vadd.f32 %v259, %v564
      %566 = vmatmul.bf16.gmra.mxu0 %v356
      %v567 = vpop.f32.mrf.mxu0
      %v568 = vadd.f32 %v259, %v567
      %v569 = vpop.f32.mrf.mxu0
      %v570 = vadd.f32 %v259, %v569
      %571 = vmatmul.bf16.gmra.mxu0 %v359
      %v572 = vpop.f32.mrf.mxu0
      %v573 = vadd.f32 %v259, %v572
      %v574 = vpop.f32.mrf.mxu0
      %v575 = vadd.f32 %v259, %v574
      %576 = vmatmul.bf16.gmra.mxu0 %v362
      %v577 = vpop.f32.mrf.mxu0
      %v578 = vadd.f32 %v259, %v577
      %v579 = vpop.f32.mrf.mxu0
      %v580 = vadd.f32 %v259, %v579
      %581 = vdwg.mxu0
      %582 = vmatpush.bf16.msra.mxu0 %v500
      %583 = vmatpush.bf16.msra.mxu0 %v499
      %584 = vmatpush.bf16.msra.mxu0 %v498
      %585 = vmatpush.bf16.msra.mxu0 %v497
      %586 = vmatpush.bf16.msra.mxu0 %v496
      %587 = vmatpush.bf16.msra.mxu0 %v495
      %588 = vmatpush.bf16.msra.mxu0 %v494
      %589 = vmatpush.bf16.msra.mxu0 %v493
      %590 = vmatmul.bf16.gmra.mxu0 %v342
      %v591 = vpop.f32.mrf.mxu0
      %v592 = vadd.f32 %v543, %v591
      %v593 = vpop.f32.mrf.mxu0
      %v594 = vadd.f32 %v545, %v593
      %595 = vmatmul.bf16.gmra.mxu0 %v345
      %v596 = vpop.f32.mrf.mxu0
      %v597 = vadd.f32 %v548, %v596
      %v598 = vpop.f32.mrf.mxu0
      %v599 = vadd.f32 %v550, %v598
      %600 = vmatmul.bf16.gmra.mxu0 %v348
      %v601 = vpop.f32.mrf.mxu0
      %v602 = vadd.f32 %v553, %v601
      %v603 = vpop.f32.mrf.mxu0
      %v604 = vadd.f32 %v555, %v603
      %605 = vmatmul.bf16.gmra.mxu0 %v351
      %v606 = vpop.f32.mrf.mxu0
      %v607 = vadd.f32 %v558, %v606
      %v608 = vpop.f32.mrf.mxu0
      %v609 = vadd.f32 %v560, %v608
      %610 = vmatmul.bf16.gmra.mxu0 %v354
      %v611 = vpop.f32.mrf.mxu0
      %v612 = vadd.f32 %v563, %v611
      %v613 = vpop.f32.mrf.mxu0
      %v614 = vadd.f32 %v565, %v613
      %615 = vmatmul.bf16.gmra.mxu0 %v357
      %v616 = vpop.f32.mrf.mxu0
      %v617 = vadd.f32 %v568, %v616
      %v618 = vpop.f32.mrf.mxu0
      %v619 = vadd.f32 %v570, %v618
      %620 = vmatmul.bf16.gmra.mxu0 %v360
      %v621 = vpop.f32.mrf.mxu0
      %v622 = vadd.f32 %v573, %v621
      %v623 = vpop.f32.mrf.mxu0
      %v624 = vadd.f32 %v575, %v623
      %625 = vmatmul.bf16.gmra.mxu0 %v363
      %v626 = vpop.f32.mrf.mxu0
      %v627 = vadd.f32 %v578, %v626
      %v628 = vpop.f32.mrf.mxu0
      %v629 = vadd.f32 %v580, %v628
      %630 = vdwg.mxu0
      %631 = vmatpush.bf16.msra.mxu0 %v508
      %632 = vmatpush.bf16.msra.mxu0 %v507
      %633 = vmatpush.bf16.msra.mxu0 %v506
      %634 = vmatpush.bf16.msra.mxu0 %v505
      %635 = vmatpush.bf16.msra.mxu0 %v504
      %636 = vmatpush.bf16.msra.mxu0 %v503
      %637 = vmatpush.bf16.msra.mxu0 %v502
      %638 = vmatpush.bf16.msra.mxu0 %v501
      %639 = vmatmul.bf16.gmra.mxu0 %v343
      %v640 = vpop.f32.mrf.mxu0
      %v641 = vadd.f32 %v592, %v640
      %v642 = vpop.f32.mrf.mxu0
      %v643 = vadd.f32 %v594, %v642
      %644 = vmatmul.bf16.gmra.mxu0 %v346
      %v645 = vpop.f32.mrf.mxu0
      %v646 = vadd.f32 %v597, %v645
      %v647 = vpop.f32.mrf.mxu0
      %v648 = vadd.f32 %v599, %v647
      %649 = vmatmul.bf16.gmra.mxu0 %v349
      %v650 = vpop.f32.mrf.mxu0
      %v651 = vadd.f32 %v602, %v650
      %v652 = vpop.f32.mrf.mxu0
      %v653 = vadd.f32 %v604, %v652
      %654 = vmatmul.bf16.gmra.mxu0 %v352
      %v655 = vpop.f32.mrf.mxu0
      %v656 = vadd.f32 %v607, %v655
      %v657 = vpop.f32.mrf.mxu0
      %v658 = vadd.f32 %v609, %v657
      %659 = vmatmul.bf16.gmra.mxu0 %v355
      %v660 = vpop.f32.mrf.mxu0
      %v661 = vadd.f32 %v612, %v660
      %v662 = vpop.f32.mrf.mxu0
      %v663 = vadd.f32 %v614, %v662
      %664 = vmatmul.bf16.gmra.mxu0 %v358
      %v665 = vpop.f32.mrf.mxu0
      %v666 = vadd.f32 %v617, %v665
      %v667 = vpop.f32.mrf.mxu0
      %v668 = vadd.f32 %v619, %v667
      %669 = vmatmul.bf16.gmra.mxu0 %v361
      %v670 = vpop.f32.mrf.mxu0
      %v671 = vadd.f32 %v622, %v670
      %v672 = vpop.f32.mrf.mxu0
      %v673 = vadd.f32 %v624, %v672
      %674 = vmatmul.bf16.gmra.mxu0 %v364
      %v675 = vpop.f32.mrf.mxu0
      %v676 = vadd.f32 %v627, %v675
      %v677 = vpop.f32.mrf.mxu0
      %v678 = vadd.f32 %v629, %v677
      %679 = vdwg.mxu0
      %v680 = vmax.f32 %v641, 0.0
      %v681 = vmax.f32 %v643, 0.0
      %v682 = vmax.f32 %v646, 0.0
      %v683 = vmax.f32 %v648, 0.0
      %v684 = vmax.f32 %v651, 0.0
      %v685 = vmax.f32 %v653, 0.0
      %v686 = vmax.f32 %v656, 0.0
      %v687 = vmax.f32 %v658, 0.0
      %v688 = vmax.f32 %v661, 0.0
      %v689 = vmax.f32 %v663, 0.0
      %v690 = vmax.f32 %v666, 0.0
      %v691 = vmax.f32 %v668, 0.0
      %v692 = vmax.f32 %v671, 0.0
      %v693 = vmax.f32 %v673, 0.0
      %v694 = vmax.f32 %v676, 0.0
      %v695 = vmax.f32 %v678, 0.0
      %v696 = vpack.c.bf16 %v680, %v680
      %v697 = vpack.c.bf16 %v681, %v681
      %v698 = vpack.c.bf16 %v682, %v682
      %v699 = vpack.c.bf16 %v683, %v683
      %v700 = vpack.c.bf16 %v684, %v684
      %v701 = vpack.c.bf16 %v685, %v685
      %v702 = vpack.c.bf16 %v686, %v686
      %v703 = vpack.c.bf16 %v687, %v687
      %v704 = vpack.c.bf16 %v688, %v688
      %v705 = vpack.c.bf16 %v689, %v689
      %v706 = vpack.c.bf16 %v690, %v690
      %v707 = vpack.c.bf16 %v691, %v691
      %v708 = vpack.c.bf16 %v692, %v692
      %v709 = vpack.c.bf16 %v693, %v693
      %v710 = vpack.c.bf16 %v694, %v694
      %v711 = vpack.c.bf16 %v695, %v695
      %712 = vst [vmem:[%s175] sm:$0xf] %v696
      %713 = vst [vmem:[%s175 + $0x4] sm:$0xf] %v697
      %714 = vst [vmem:[%s175 + $0x8] sm:$0xf] %v698
      %715 = vst [vmem:[%s175 + $0xc] sm:$0xf] %v699
      %716 = vst [vmem:[%s175 + $0x10] sm:$0xf] %v700
      %717 = vst [vmem:[%s175 + $0x14] sm:$0xf] %v701
      %718 = vst [vmem:[%s175 + $0x18] sm:$0xf] %v702
      %719 = vst [vmem:[%s175 + $0x1c] sm:$0xf] %v703
      %720 = vst [vmem:[%s175 + $0x20] sm:$0xf] %v704
      %721 = vst [vmem:[%s175 + $0x24] sm:$0xf] %v705
      %722 = vst [vmem:[%s175 + $0x28] sm:$0xf] %v706
      %723 = vst [vmem:[%s175 + $0x2c] sm:$0xf] %v707
      %724 = vst [vmem:[%s175 + $0x30] sm:$0xf] %v708
      %725 = vst [vmem:[%s175 + $0x34] sm:$0xf] %v709
      %726 = vst [vmem:[%s175 + $0x38] sm:$0xf] %v710
      %727 = vst [vmem:[%s175 + $0x3c] sm:$0xf] %v711
      %s728 = smul.u32 16, %s14
      %p729 = scmp.lt.s32.totalorder %s728, 47
      %s730 = scalar_select %p729, %s728, 47
      %s731 = smul.addr %s730, 4
      %s732 = scalar_lea.vmem %s3, %s731
      // Predicated region
      $region33: #{gcn_forward.5} parent=31 // pred_check
        %p733 = pneg %p100
      $region34: #{gcn_forward.5} parent=31 // pred_check_branch
        %735 = sbr.rel (%p733) target = $region36
      $region35: #{gcn_forward.5} parent=31 // pred_region
        %s736 = smul.u32 16, %s14
      $region36: #{gcn_forward.5} parent=31 // pred_fallthru
        _
    $region32: #{gcn_forward.5} parent=5 // pred_fallthru
      _
    %p737 = scmp.le.s32.totalorder 2, %s9
    // Predicated region
    $region37: #{gcn_forward.5} parent=5 // pred_check
      %p738 = pneg %p737
    $region38: #{gcn_forward.5} parent=5 // pred_check_branch
      %740 = sbr.rel (%p738) target = $region40
    $region39: #{gcn_forward.5} parent=5 // pred_region
      %s741 = ssub.s32 %s9, 2
      // Predicated region
      $region41: #{gcn_forward.5} parent=39 // pred_check
        %p742 = pneg %p106
      $region42: #{gcn_forward.5} parent=39 // pred_check_branch
        %744 = sbr.rel (%p742) target = $region44
      $region43: #{gcn_forward.5} parent=39 // pred_region
        %s745 = smul.u32 16, %s15
        %p746 = scmp.lt.s32.totalorder %s745, 47
        %s747 = scalar_select %p746, %s745, 47
        %s748 = smul.addr %s747, 4
        %s749 = scalar_lea.vmem %s3, %s748
      $region44: #{gcn_forward.5} parent=39 // pred_fallthru
        _
    $region40: #{gcn_forward.5} parent=5 // pred_fallthru
      _
  $region6: #{gcn_forward.5} parent=0 // loop_footer
    %s13 = sadd.s32 1, %s9
  $region7: #{gcn_forward.5} parent=0 // loop_footer_branch
    %8 = sbr.rel target = $region3
  $region8: #{gcn_forward.5} parent=0 // loop_exit
    _

// kernel: gcn_forward.7
$region0: #{gcn_forward.7}
  #allocation0 [shape = 'u32[]', space=smem, size = 0x4, offset = 0x4, fixed_abs, tag = 'smem constant byte address 0x4 - core index']
  #allocation1 [shape = 'u32[72,128]{1,0:T(1,128)}', space=vmem, size = 0x9000, scoped, tag = 'internal scratch']
  %s0 = inlined_call_operand.vmem [shape: bf16[384,384], index: 0, kind: input, shape index: {}]
  %s1 = inlined_call_operand.vmem [shape: bf16[384,128], index: 1, kind: input, shape index: {}]
  %s2 = inlined_call_operand.vmem [shape: f32[1,128], index: 2, kind: input, shape index: {}]
  %s3 = inlined_call_operand.vmem [shape: f32[384,128], index: 3, kind: output, shape index: {}]
  %s4 = sld [smem:[#allocation0]]
  $region45: #{gcn_forward.7} parent=0
    _
  %s6 = ssub.s32 1, %s4
  %s7 = scalar_select 0, %s6, %s4
  loop: start=0, step=1, limit=5
  $region2: #{gcn_forward.7} parent=0 // loop_pre_header
    _
  $region3: #{gcn_forward.7} parent=0 // loop_header
    %s9 = sphi 0, %s13
    %p10 = scmp.ge.s32.totalorder %s9, 5
    %s19 = sphi 0, %s21
    %s22 = sphi 0, %s19
    %s23 = sphi 0, %s22
    %s39 = sphi 0, %s23
    %s43 = sphi 0, %s43
    %s45 = sphi 0, %s43
    %s46 = sphi 0, %s45
    %s60 = sphi 0, %s46
    %s64 = sphi 0, %s64
    %s66 = sphi 0, %s64
    %s67 = sphi 0, %s66
    %s81 = sphi 0, %s67
    %s87 = sphi 0, %s89
    %s90 = sphi 0, %s87
    %s91 = sphi 0, %s90
    %s107 = sphi 0, %s91
  $region4: #{gcn_forward.7} parent=0 // loop_header_branch
    %12 = sbr.rel (%p10) target = $region8
  $region5: #{gcn_forward.7} parent=0 // loop_body
    %s14 = ssub.s32 %s9, 1
    %s15 = ssub.s32 %s9, 2
    %s16 = sadd.s32 %s9, 1
    %s17 = ssub.s32 %s9, %s16
    %p18 = scmp.eq.s32.totalorder %s17, 0
    %s20 = sadd.s32 %s19, 1
    %s21 = scalar_select %p18, %s19, %s20
    %p24 = pneg %p18
    %p25 = scmp.eq.s32.totalorder %s9, 2
    %p26 = por %p24, %p25
    %p27 = scmp.ne.s32.totalorder %s19, %s22
    %p28 = scmp.eq.s32.totalorder %s9, 0
    %p29 = por %p27, %p28
    %p30 = scmp.ne.s32.totalorder %s19, %s22
    %p31 = scmp.eq.s32.totalorder %s14, 2
    %p32 = por %p30, %p31
    %p33 = scmp.ne.s32.totalorder %s22, %s23
    %p34 = scmp.eq.s32.totalorder %s14, 0
    %p35 = por %p33, %p34
    %p36 = scmp.ne.s32.totalorder %s22, %s23
    %p37 = scmp.eq.s32.totalorder %s15, 2
    %p38 = por %p36, %p37
    %p40 = scmp.ne.s32.totalorder %s23, %s39
    %p41 = scmp.eq.s32.totalorder %s15, 0
    %p42 = por %p40, %p41
    %s44 = sadd.s32 %s43, 1
    %p47 = scmp.eq.s32.totalorder %s9, 2
    %p48 = scmp.ne.s32.totalorder %s43, %s45
    %p49 = scmp.eq.s32.totalorder %s9, 0
    %p50 = por %p48, %p49
    %p51 = scmp.ne.s32.totalorder %s43, %s45
    %p52 = scmp.eq.s32.totalorder %s14, 2
    %p53 = por %p51, %p52
    %p54 = scmp.ne.s32.totalorder %s45, %s46
    %p55 = scmp.eq.s32.totalorder %s14, 0
    %p56 = por %p54, %p55
    %p57 = scmp.ne.s32.totalorder %s45, %s46
    %p58 = scmp.eq.s32.totalorder %s15, 2
    %p59 = por %p57, %p58
    %p61 = scmp.ne.s32.totalorder %s46, %s60
    %p62 = scmp.eq.s32.totalorder %s15, 0
    %p63 = por %p61, %p62
    %s65 = sadd.s32 %s64, 1
    %p68 = scmp.eq.s32.totalorder %s9, 2
    %p69 = scmp.ne.s32.totalorder %s64, %s66
    %p70 = scmp.eq.s32.totalorder %s9, 0
    %p71 = por %p69, %p70
    %p72 = scmp.ne.s32.totalorder %s64, %s66
    %p73 = scmp.eq.s32.totalorder %s14, 2
    %p74 = por %p72, %p73
    %p75 = scmp.ne.s32.totalorder %s66, %s67
    %p76 = scmp.eq.s32.totalorder %s14, 0
    %p77 = por %p75, %p76
    %p78 = scmp.ne.s32.totalorder %s66, %s67
    %p79 = scmp.eq.s32.totalorder %s15, 2
    %p80 = por %p78, %p79
    %p82 = scmp.ne.s32.totalorder %s67, %s81
    %p83 = scmp.eq.s32.totalorder %s15, 0
    %p84 = por %p82, %p83
    %s85 = ssub.s32 %s9, %s16
    %p86 = scmp.eq.s32.totalorder %s85, 0
    %s88 = sadd.s32 %s87, 1
    %s89 = scalar_select %p86, %s87, %s88
    %p92 = pneg %p86
    %p93 = scmp.eq.s32.totalorder %s9, 2
    %p94 = por %p92, %p93
    %p95 = scmp.ne.s32.totalorder %s87, %s90
    %p96 = scmp.eq.s32.totalorder %s9, 0
    %p97 = por %p95, %p96
    %p98 = scmp.ne.s32.totalorder %s87, %s90
    %p99 = scmp.eq.s32.totalorder %s14, 2
    %p100 = por %p98, %p99
    %p101 = scmp.ne.s32.totalorder %s90, %s91
    %p102 = scmp.eq.s32.totalorder %s14, 0
    %p103 = por %p101, %p102
    %p104 = scmp.ne.s32.totalorder %s90, %s91
    %p105 = scmp.eq.s32.totalorder %s15, 2
    %p106 = por %p104, %p105
    %p108 = scmp.ne.s32.totalorder %s91, %s107
    %p109 = scmp.eq.s32.totalorder %s15, 0
    %p110 = por %p108, %p109
    %p111 = scmp.le.s32.totalorder 1, %s9
    %p112 = scmp.lt.s32.totalorder %s9, 4
    %p113 = pnand %p111, %p112
    %p114 = pneg %p113
    // Predicated region
    $region9: #{gcn_forward.7} parent=5 // pred_check
      _
    $region10: #{gcn_forward.7} parent=5 // pred_check_branch
      %116 = sbr.rel (%p113) target = $region12
    $region11: #{gcn_forward.7} parent=5 // pred_region
      %s117 = ssub.s32 %s9, 1
      // Predicated region
      $region13: #{gcn_forward.7} parent=11 // pred_check
        %p118 = pneg %p56
      $region14: #{gcn_forward.7} parent=11 // pred_check_branch
        %120 = sbr.rel (%p118) target = $region16
      $region15: #{gcn_forward.7} parent=11 // pred_region
        _
      $region16: #{gcn_forward.7} parent=11 // pred_fallthru
        _
      // Predicated region
      $region17: #{gcn_forward.7} parent=11 // pred_check
        %p121 = pneg %p77
      $region18: #{gcn_forward.7} parent=11 // pred_check_branch
        %123 = sbr.rel (%p121) target = $region20
      $region19: #{gcn_forward.7} parent=11 // pred_region
        _
      $region20: #{gcn_forward.7} parent=11 // pred_fallthru
        _
    $region12: #{gcn_forward.7} parent=5 // pred_fallthru
      _
    %p124 = scmp.lt.s32.totalorder %s9, 3
    // Predicated region
    $region21: #{gcn_forward.7} parent=5 // pred_check
      %p125 = pneg %p124
    $region22: #{gcn_forward.7} parent=5 // pred_check_branch
      %127 = sbr.rel (%p125) target = $region24
    $region23: #{gcn_forward.7} parent=5 // pred_region
      // Predicated region
      $region25: #{gcn_forward.7} parent=23 // pred_check
        %p128 = pneg %p29
      $region26: #{gcn_forward.7} parent=23 // pred_check_branch
        %130 = sbr.rel (%p128) target = $region28
      $region27: #{gcn_forward.7} parent=23 // pred_region
        %s131 = smul.u32 16, %s9
        %p132 = scmp.lt.s32.totalorder %s131, 47
        %s133 = scalar_select %p132, %s131, 47
        %s134 = smul.addr %s133, 3
        %s135 = smul.addr %s134, 4
        %s136 = scalar_lea.vmem %s0, %s135
        %s137 = smul.u32 16, %s9
      $region28: #{gcn_forward.7} parent=23 // pred_fallthru
        _
    $region24: #{gcn_forward.7} parent=5 // pred_fallthru
      _
    %p138 = scmp.le.s32.totalorder 1, %s9
    %p139 = scmp.lt.s32.totalorder %s9, 4
    %p140 = pnand %p138, %p139
    %p141 = pneg %p140
    // Predicated region
    $region29: #{gcn_forward.7} parent=5 // pred_check
      _
    $region30: #{gcn_forward.7} parent=5 // pred_check_branch
      %143 = sbr.rel (%p140) target = $region32
    $region31: #{gcn_forward.7} parent=5 // pred_region
      %s144 = ssub.s32 %s9, 1
      %s145 = smul.u32 16, %s14
      %p146 = scmp.lt.s32.totalorder %s145, 47
      %s147 = scalar_select %p146, %s145, 47
      %s148 = smul.addr %s147, 3
      %s149 = smul.addr %s148, 4
      %s150 = scalar_lea.vmem %s0, %s149
      %p151 = pneg %p35
      %p152 = pneg %p32
      %p153 = pneg %p56
      %p154 = pneg %p53
      %p155 = pneg %p77
      %p156 = pneg %p74
      %p157 = pneg %p103
      %p158 = pneg %p100
      %s159 = smul.u32 16, %s14
      %p160 = scmp.lt.s32.totalorder %s159, 47
      %s161 = scalar_select %p160, %s159, 47
      %s162 = smul.addr %s161, 8
      %s163 = scalar_lea.vmem %s3, %s162
      %s164 = smul.u32 16, %s14
      %p165 = scmp.lt.s32.totalorder %s164, 47
      %s166 = scalar_select %p165, %s164, 47
      %s167 = smul.addr %s166, 3
      %s168 = smul.addr %s167, 4
      %s169 = scalar_lea.vmem %s0, %s168
      %s170 = smul.u32 16, %s14
      %s171 = smul.u32 16, %s14
      %p172 = scmp.lt.s32.totalorder %s171, 47
      %s173 = scalar_select %p172, %s171, 47
      %s174 = smul.addr %s173, 8
      %s175 = scalar_lea.vmem %s3, %s174
      %s176 = smul.u32 16, %s14
      %v177 = vld [vmem:[%s169] sm:$0xff]
      %v178 = vld [vmem:[%s169 + $0x8] sm:$0xf]
      %v179 = vld [vmem:[%s169 + $0xc] sm:$0xff]
      %v180 = vld [vmem:[%s169 + $0x14] sm:$0xf]
      %v181 = vld [vmem:[%s169 + $0x18] sm:$0xff]
      %v182 = vld [vmem:[%s169 + $0x20] sm:$0xf]
      %v183 = vld [vmem:[%s169 + $0x24] sm:$0xff]
      %v184 = vld [vmem:[%s169 + $0x2c] sm:$0xf]
      %v185 = vld [vmem:[%s169 + $0x30] sm:$0xff]
      %v186 = vld [vmem:[%s169 + $0x38] sm:$0xf]
      %v187 = vld [vmem:[%s169 + $0x3c] sm:$0xff]
      %v188 = vld [vmem:[%s169 + $0x44] sm:$0xf]
      %v189 = vld [vmem:[%s169 + $0x48] sm:$0xff]
      %v190 = vld [vmem:[%s169 + $0x50] sm:$0xf]
      %v191 = vld [vmem:[%s169 + $0x54] sm:$0xff]
      %v192 = vld [vmem:[%s169 + $0x5c] sm:$0xf]
      %v193 = vld [vmem:[%s169 + $0x60] sm:$0xff]
      %v194 = vld [vmem:[%s169 + $0x68] sm:$0xf]
      %v195 = vld [vmem:[%s169 + $0x6c] sm:$0xff]
      %v196 = vld [vmem:[%s169 + $0x74] sm:$0xf]
      %v197 = vld [vmem:[%s169 + $0x78] sm:$0xff]
      %v198 = vld [vmem:[%s169 + $0x80] sm:$0xf]
      %v199 = vld [vmem:[%s169 + $0x84] sm:$0xff]
      %v200 = vld [vmem:[%s169 + $0x8c] sm:$0xf]
      %v201 = vld [vmem:[%s169 + $0x90] sm:$0xff]
      %v202 = vld [vmem:[%s169 + $0x98] sm:$0xf]
      %v203 = vld [vmem:[%s169 + $0x9c] sm:$0xff]
      %v204 = vld [vmem:[%s169 + $0xa4] sm:$0xf]
      %v205 = vld [vmem:[%s169 + $0xa8] sm:$0xff]
      %v206 = vld [vmem:[%s169 + $0xb0] sm:$0xf]
      %v207 = vld [vmem:[%s169 + $0xb4] sm:$0xff]
      %v208 = vld [vmem:[%s169 + $0xbc] sm:$0xf]
      %v209 = vld [vmem:[%s1] sm:$0xf]
      %v210 = vld [vmem:[%s1 + $0x4] sm:$0xf]
      %v211 = vld [vmem:[%s1 + $0x8] sm:$0xf]
      %v212 = vld [vmem:[%s1 + $0xc] sm:$0xf]
      %v213 = vld [vmem:[%s1 + $0x10] sm:$0xf]
      %v214 = vld [vmem:[%s1 + $0x14] sm:$0xf]
      %v215 = vld [vmem:[%s1 + $0x18] sm:$0xf]
      %v216 = vld [vmem:[%s1 + $0x1c] sm:$0xf]
      %v217 = vld [vmem:[%s1 + $0x20] sm:$0xf]
      %v218 = vld [vmem:[%s1 + $0x24] sm:$0xf]
      %v219 = vld [vmem:[%s1 + $0x28] sm:$0xf]
      %v220 = vld [vmem:[%s1 + $0x2c] sm:$0xf]
      %v221 = vld [vmem:[%s1 + $0x30] sm:$0xf]
      %v222 = vld [vmem:[%s1 + $0x34] sm:$0xf]
      %v223 = vld [vmem:[%s1 + $0x38] sm:$0xf]
      %v224 = vld [vmem:[%s1 + $0x3c] sm:$0xf]
      %v225 = vld [vmem:[%s1 + $0x40] sm:$0xf]
      %v226 = vld [vmem:[%s1 + $0x44] sm:$0xf]
      %v227 = vld [vmem:[%s1 + $0x48] sm:$0xf]
      %v228 = vld [vmem:[%s1 + $0x4c] sm:$0xf]
      %v229 = vld [vmem:[%s1 + $0x50] sm:$0xf]
      %v230 = vld [vmem:[%s1 + $0x54] sm:$0xf]
      %v231 = vld [vmem:[%s1 + $0x58] sm:$0xf]
      %v232 = vld [vmem:[%s1 + $0x5c] sm:$0xf]
      %v233 = vld [vmem:[%s1 + $0x60] sm:$0xf]
      %v234 = vld [vmem:[%s1 + $0x64] sm:$0xf]
      %v235 = vld [vmem:[%s1 + $0x68] sm:$0xf]
      %v236 = vld [vmem:[%s1 + $0x6c] sm:$0xf]
      %v237 = vld [vmem:[%s1 + $0x70] sm:$0xf]
      %v238 = vld [vmem:[%s1 + $0x74] sm:$0xf]
      %v239 = vld [vmem:[%s1 + $0x78] sm:$0xf]
      %v240 = vld [vmem:[%s1 + $0x7c] sm:$0xf]
      %v241 = vld [vmem:[%s1 + $0x80] sm:$0xf]
      %v242 = vld [vmem:[%s1 + $0x84] sm:$0xf]
      %v243 = vld [vmem:[%s1 + $0x88] sm:$0xf]
      %v244 = vld [vmem:[%s1 + $0x8c] sm:$0xf]
      %v245 = vld [vmem:[%s1 + $0x90] sm:$0xf]
      %v246 = vld [vmem:[%s1 + $0x94] sm:$0xf]
      %v247 = vld [vmem:[%s1 + $0x98] sm:$0xf]
      %v248 = vld [vmem:[%s1 + $0x9c] sm:$0xf]
      %v249 = vld [vmem:[%s1 + $0xa0] sm:$0xf]
      %v250 = vld [vmem:[%s1 + $0xa4] sm:$0xf]
      %v251 = vld [vmem:[%s1 + $0xa8] sm:$0xf]
      %v252 = vld [vmem:[%s1 + $0xac] sm:$0xf]
      %v253 = vld [vmem:[%s1 + $0xb0] sm:$0xf]
      %v254 = vld [vmem:[%s1 + $0xb4] sm:$0xf]
      %v255 = vld [vmem:[%s1 + $0xb8] sm:$0xf]
      %v256 = vld [vmem:[%s1 + $0xbc] sm:$0xf]
      %v257 = vld [vmem:[%s2] sm:$0x1]
      %v259 = vperm.slane %v257, 0
      %v293 = vunpack.c.l.b16 %v177
      %v294 = vunpack.c.h.b16 %v177
      %v295 = vunpack.c.l.b16 %v178
      %v296 = vunpack.c.l.b16 %v179
      %v297 = vunpack.c.h.b16 %v179
      %v298 = vunpack.c.l.b16 %v180
      %v299 = vunpack.c.l.b16 %v181
      %v300 = vunpack.c.h.b16 %v181
      %v301 = vunpack.c.l.b16 %v182
      %v302 = vunpack.c.l.b16 %v183
      %v303 = vunpack.c.h.b16 %v183
      %v304 = vunpack.c.l.b16 %v184
      %v305 = vunpack.c.l.b16 %v185
      %v306 = vunpack.c.h.b16 %v185
      %v307 = vunpack.c.l.b16 %v186
      %v308 = vunpack.c.l.b16 %v187
      %v309 = vunpack.c.h.b16 %v187
      %v310 = vunpack.c.l.b16 %v188
      %v311 = vunpack.c.l.b16 %v189
      %v312 = vunpack.c.h.b16 %v189
      %v313 = vunpack.c.l.b16 %v190
      %v314 = vunpack.c.l.b16 %v191
      %v315 = vunpack.c.h.b16 %v191
      %v316 = vunpack.c.l.b16 %v192
      %v317 = vunpack.c.l.b16 %v193
      %v318 = vunpack.c.h.b16 %v193
      %v319 = vunpack.c.l.b16 %v194
      %v320 = vunpack.c.l.b16 %v195
      %v321 = vunpack.c.h.b16 %v195
      %v322 = vunpack.c.l.b16 %v196
      %v323 = vunpack.c.l.b16 %v197
      %v324 = vunpack.c.h.b16 %v197
      %v325 = vunpack.c.l.b16 %v198
      %v326 = vunpack.c.l.b16 %v199
      %v327 = vunpack.c.h.b16 %v199
      %v328 = vunpack.c.l.b16 %v200
      %v329 = vunpack.c.l.b16 %v201
      %v330 = vunpack.c.h.b16 %v201
      %v331 = vunpack.c.l.b16 %v202
      %v332 = vunpack.c.l.b16 %v203
      %v333 = vunpack.c.h.b16 %v203
      %v334 = vunpack.c.l.b16 %v204
      %v335 = vunpack.c.l.b16 %v205
      %v336 = vunpack.c.h.b16 %v205
      %v337 = vunpack.c.l.b16 %v206
      %v338 = vunpack.c.l.b16 %v207
      %v339 = vunpack.c.h.b16 %v207
      %v340 = vunpack.c.l.b16 %v208
      %v341 = vpack.c.b16 %v296, %v293
      %v342 = vpack.c.b16 %v297, %v294
      %v343 = vpack.c.b16 %v298, %v295
      %v344 = vpack.c.b16 %v302, %v299
      %v345 = vpack.c.b16 %v303, %v300
      %v346 = vpack.c.b16 %v304, %v301
      %v347 = vpack.c.b16 %v308, %v305
      %v348 = vpack.c.b16 %v309, %v306
      %v349 = vpack.c.b16 %v310, %v307
      %v350 = vpack.c.b16 %v314, %v311
      %v351 = vpack.c.b16 %v315, %v312
      %v352 = vpack.c.b16 %v316, %v313
      %v353 = vpack.c.b16 %v320, %v317
      %v354 = vpack.c.b16 %v321, %v318
      %v355 = vpack.c.b16 %v322, %v319
      %v356 = vpack.c.b16 %v326, %v323
      %v357 = vpack.c.b16 %v327, %v324
      %v358 = vpack.c.b16 %v328, %v325
      %v359 = vpack.c.b16 %v332, %v329
      %v360 = vpack.c.b16 %v333, %v330
      %v361 = vpack.c.b16 %v334, %v331
      %v362 = vpack.c.b16 %v338, %v335
      %v363 = vpack.c.b16 %v339, %v336
      %v364 = vpack.c.b16 %v340, %v337
      %v437 = vunpack.c.l.b16 %v209
      %v438 = vunpack.c.l.b16 %v210
      %v439 = vunpack.c.l.b16 %v211
      %v440 = vunpack.c.l.b16 %v212
      %v441 = vunpack.c.l.b16 %v213
      %v442 = vunpack.c.l.b16 %v214
      %v443 = vunpack.c.l.b16 %v215
      %v444 = vunpack.c.l.b16 %v216
      %v445 = vunpack.c.l.b16 %v217
      %v446 = vunpack.c.l.b16 %v218
      %v447 = vunpack.c.l.b16 %v219
      %v448 = vunpack.c.l.b16 %v220
      %v449 = vunpack.c.l.b16 %v221
      %v450 = vunpack.c.l.b16 %v222
      %v451 = vunpack.c.l.b16 %v223
      %v452 = vunpack.c.l.b16 %v224
      %v453 = vunpack.c.l.b16 %v225
      %v454 = vunpack.c.l.b16 %v226
      %v455 = vunpack.c.l.b16 %v227
      %v456 = vunpack.c.l.b16 %v228
      %v457 = vunpack.c.l.b16 %v229
      %v458 = vunpack.c.l.b16 %v230
      %v459 = vunpack.c.l.b16 %v231
      %v460 = vunpack.c.l.b16 %v232
      %v461 = vunpack.c.l.b16 %v233
      %v462 = vunpack.c.l.b16 %v234
      %v463 = vunpack.c.l.b16 %v235
      %v464 = vunpack.c.l.b16 %v236
      %v465 = vunpack.c.l.b16 %v237
      %v466 = vunpack.c.l.b16 %v238
      %v467 = vunpack.c.l.b16 %v239
      %v468 = vunpack.c.l.b16 %v240
      %v469 = vunpack.c.l.b16 %v241
      %v470 = vunpack.c.l.b16 %v242
      %v471 = vunpack.c.l.b16 %v243
      %v472 = vunpack.c.l.b16 %v244
      %v473 = vunpack.c.l.b16 %v245
      %v474 = vunpack.c.l.b16 %v246
      %v475 = vunpack.c.l.b16 %v247
      %v476 = vunpack.c.l.b16 %v248
      %v477 = vunpack.c.l.b16 %v249
      %v478 = vunpack.c.l.b16 %v250
      %v479 = vunpack.c.l.b16 %v251
      %v480 = vunpack.c.l.b16 %v252
      %v481 = vunpack.c.l.b16 %v253
      %v482 = vunpack.c.l.b16 %v254
      %v483 = vunpack.c.l.b16 %v255
      %v484 = vunpack.c.l.b16 %v256
      %v485 = vpack.c.b16 %v438, %v437
      %v486 = vpack.c.b16 %v440, %v439
      %v487 = vpack.c.b16 %v442, %v441
      %v488 = vpack.c.b16 %v444, %v443
      %v489 = vpack.c.b16 %v446, %v445
      %v490 = vpack.c.b16 %v448, %v447
      %v491 = vpack.c.b16 %v450, %v449
      %v492 = vpack.c.b16 %v452, %v451
      %v493 = vpack.c.b16 %v454, %v453
      %v494 = vpack.c.b16 %v456, %v455
      %v495 = vpack.c.b16 %v458, %v457
      %v496 = vpack.c.b16 %v460, %v459
      %v497 = vpack.c.b16 %v462, %v461
      %v498 = vpack.c.b16 %v464, %v463
      %v499 = vpack.c.b16 %v466, %v465
      %v500 = vpack.c.b16 %v468, %v467
      %v501 = vpack.c.b16 %v470, %v469
      %v502 = vpack.c.b16 %v472, %v471
      %v503 = vpack.c.b16 %v474, %v473
      %v504 = vpack.c.b16 %v476, %v475
      %v505 = vpack.c.b16 %v478, %v477
      %v506 = vpack.c.b16 %v480, %v479
      %v507 = vpack.c.b16 %v482, %v481
      %v508 = vpack.c.b16 %v484, %v483
      %533 = vmatpush.bf16.msra.mxu0 %v492
      %534 = vmatpush.bf16.msra.mxu0 %v491
      %535 = vmatpush.bf16.msra.mxu0 %v490
      %536 = vmatpush.bf16.msra.mxu0 %v489
      %537 = vmatpush.bf16.msra.mxu0 %v488
      %538 = vmatpush.bf16.msra.mxu0 %v487
      %539 = vmatpush.bf16.msra.mxu0 %v486
      %540 = vmatpush.bf16.msra.mxu0 %v485
      %541 = vmatmul.bf16.gmra.mxu0 %v341
      %v542 = vpop.f32.mrf.mxu0
      %v543 = vadd.f32 %v259, %v542
      %v544 = vpop.f32.mrf.mxu0
      %v545 = vadd.f32 %v259, %v544
      %546 = vmatmul.bf16.gmra.mxu0 %v344
      %v547 = vpop.f32.mrf.mxu0
      %v548 = vadd.f32 %v259, %v547
      %v549 = vpop.f32.mrf.mxu0
      %v550 = vadd.f32 %v259, %v549
      %551 = vmatmul.bf16.gmra.mxu0 %v347
      %v552 = vpop.f32.mrf.mxu0
      %v553 = vadd.f32 %v259, %v552
      %v554 = vpop.f32.mrf.mxu0
      %v555 = vadd.f32 %v259, %v554
      %556 = vmatmul.bf16.gmra.mxu0 %v350
      %v557 = vpop.f32.mrf.mxu0
      %v558 = vadd.f32 %v259, %v557
      %v559 = vpop.f32.mrf.mxu0
      %v560 = vadd.f32 %v259, %v559
      %561 = vmatmul.bf16.gmra.mxu0 %v353
      %v562 = vpop.f32.mrf.mxu0
      %v563 = vadd.f32 %v259, %v562
      %v564 = vpop.f32.mrf.mxu0
      %v565 = vadd.f32 %v259, %v564
      %566 = vmatmul.bf16.gmra.mxu0 %v356
      %v567 = vpop.f32.mrf.mxu0
      %v568 = vadd.f32 %v259, %v567
      %v569 = vpop.f32.mrf.mxu0
      %v570 = vadd.f32 %v259, %v569
      %571 = vmatmul.bf16.gmra.mxu0 %v359
      %v572 = vpop.f32.mrf.mxu0
      %v573 = vadd.f32 %v259, %v572
      %v574 = vpop.f32.mrf.mxu0
      %v575 = vadd.f32 %v259, %v574
      %576 = vmatmul.bf16.gmra.mxu0 %v362
      %v577 = vpop.f32.mrf.mxu0
      %v578 = vadd.f32 %v259, %v577
      %v579 = vpop.f32.mrf.mxu0
      %v580 = vadd.f32 %v259, %v579
      %581 = vdwg.mxu0
      %582 = vmatpush.bf16.msra.mxu0 %v500
      %583 = vmatpush.bf16.msra.mxu0 %v499
      %584 = vmatpush.bf16.msra.mxu0 %v498
      %585 = vmatpush.bf16.msra.mxu0 %v497
      %586 = vmatpush.bf16.msra.mxu0 %v496
      %587 = vmatpush.bf16.msra.mxu0 %v495
      %588 = vmatpush.bf16.msra.mxu0 %v494
      %589 = vmatpush.bf16.msra.mxu0 %v493
      %590 = vmatmul.bf16.gmra.mxu0 %v342
      %v591 = vpop.f32.mrf.mxu0
      %v592 = vadd.f32 %v543, %v591
      %v593 = vpop.f32.mrf.mxu0
      %v594 = vadd.f32 %v545, %v593
      %595 = vmatmul.bf16.gmra.mxu0 %v345
      %v596 = vpop.f32.mrf.mxu0
      %v597 = vadd.f32 %v548, %v596
      %v598 = vpop.f32.mrf.mxu0
      %v599 = vadd.f32 %v550, %v598
      %600 = vmatmul.bf16.gmra.mxu0 %v348
      %v601 = vpop.f32.mrf.mxu0
      %v602 = vadd.f32 %v553, %v601
      %v603 = vpop.f32.mrf.mxu0
      %v604 = vadd.f32 %v555, %v603
      %605 = vmatmul.bf16.gmra.mxu0 %v351
      %v606 = vpop.f32.mrf.mxu0
      %v607 = vadd.f32 %v558, %v606
      %v608 = vpop.f32.mrf.mxu0
      %v609 = vadd.f32 %v560, %v608
      %610 = vmatmul.bf16.gmra.mxu0 %v354
      %v611 = vpop.f32.mrf.mxu0
      %v612 = vadd.f32 %v563, %v611
      %v613 = vpop.f32.mrf.mxu0
      %v614 = vadd.f32 %v565, %v613
      %615 = vmatmul.bf16.gmra.mxu0 %v357
      %v616 = vpop.f32.mrf.mxu0
      %v617 = vadd.f32 %v568, %v616
      %v618 = vpop.f32.mrf.mxu0
      %v619 = vadd.f32 %v570, %v618
      %620 = vmatmul.bf16.gmra.mxu0 %v360
      %v621 = vpop.f32.mrf.mxu0
      %v622 = vadd.f32 %v573, %v621
      %v623 = vpop.f32.mrf.mxu0
      %v624 = vadd.f32 %v575, %v623
      %625 = vmatmul.bf16.gmra.mxu0 %v363
      %v626 = vpop.f32.mrf.mxu0
      %v627 = vadd.f32 %v578, %v626
      %v628 = vpop.f32.mrf.mxu0
      %v629 = vadd.f32 %v580, %v628
      %630 = vdwg.mxu0
      %631 = vmatpush.bf16.msra.mxu0 %v508
      %632 = vmatpush.bf16.msra.mxu0 %v507
      %633 = vmatpush.bf16.msra.mxu0 %v506
      %634 = vmatpush.bf16.msra.mxu0 %v505
      %635 = vmatpush.bf16.msra.mxu0 %v504
      %636 = vmatpush.bf16.msra.mxu0 %v503
      %637 = vmatpush.bf16.msra.mxu0 %v502
      %638 = vmatpush.bf16.msra.mxu0 %v501
      %639 = vmatmul.bf16.gmra.mxu0 %v343
      %v640 = vpop.f32.mrf.mxu0
      %v641 = vadd.f32 %v592, %v640
      %v642 = vpop.f32.mrf.mxu0
      %v643 = vadd.f32 %v594, %v642
      %644 = vmatmul.bf16.gmra.mxu0 %v346
      %v645 = vpop.f32.mrf.mxu0
      %v646 = vadd.f32 %v597, %v645
      %v647 = vpop.f32.mrf.mxu0
      %v648 = vadd.f32 %v599, %v647
      %649 = vmatmul.bf16.gmra.mxu0 %v349
      %v650 = vpop.f32.mrf.mxu0
      %v651 = vadd.f32 %v602, %v650
      %v652 = vpop.f32.mrf.mxu0
      %v653 = vadd.f32 %v604, %v652
      %654 = vmatmul.bf16.gmra.mxu0 %v352
      %v655 = vpop.f32.mrf.mxu0
      %v656 = vadd.f32 %v607, %v655
      %v657 = vpop.f32.mrf.mxu0
      %v658 = vadd.f32 %v609, %v657
      %659 = vmatmul.bf16.gmra.mxu0 %v355
      %v660 = vpop.f32.mrf.mxu0
      %v661 = vadd.f32 %v612, %v660
      %v662 = vpop.f32.mrf.mxu0
      %v663 = vadd.f32 %v614, %v662
      %664 = vmatmul.bf16.gmra.mxu0 %v358
      %v665 = vpop.f32.mrf.mxu0
      %v666 = vadd.f32 %v617, %v665
      %v667 = vpop.f32.mrf.mxu0
      %v668 = vadd.f32 %v619, %v667
      %669 = vmatmul.bf16.gmra.mxu0 %v361
      %v670 = vpop.f32.mrf.mxu0
      %v671 = vadd.f32 %v622, %v670
      %v672 = vpop.f32.mrf.mxu0
      %v673 = vadd.f32 %v624, %v672
      %674 = vmatmul.bf16.gmra.mxu0 %v364
      %v675 = vpop.f32.mrf.mxu0
      %v676 = vadd.f32 %v627, %v675
      %v677 = vpop.f32.mrf.mxu0
      %v678 = vadd.f32 %v629, %v677
      %679 = vdwg.mxu0
      %v680 = vlaneseq
      %v681 = vand.u32 %v680, 127
      %vm682 = vcmp.lt.s32.totalorder %v681, 8
      %v683 = vsel %vm682, %v641, -1e+30
      %v684 = vsel %vm682, %v643, -1e+30
      %v685 = vsel %vm682, %v646, -1e+30
      %v686 = vsel %vm682, %v648, -1e+30
      %v687 = vsel %vm682, %v651, -1e+30
      %v688 = vsel %vm682, %v653, -1e+30
      %v689 = vsel %vm682, %v656, -1e+30
      %v690 = vsel %vm682, %v658, -1e+30
      %v691 = vsel %vm682, %v661, -1e+30
      %v692 = vsel %vm682, %v663, -1e+30
      %v693 = vsel %vm682, %v666, -1e+30
      %v694 = vsel %vm682, %v668, -1e+30
      %v695 = vsel %vm682, %v671, -1e+30
      %v696 = vsel %vm682, %v673, -1e+30
      %v697 = vsel %vm682, %v676, -1e+30
      %v698 = vsel %vm682, %v678, -1e+30
      %699 = vmax.xlane.f32.xlu0 %v683
      %v700 = vpop.xlane.xlu0 %699
      %701 = vmax.xlane.f32.xlu0 %v684
      %v702 = vpop.xlane.xlu0 %701
      %703 = vmax.xlane.f32.xlu0 %v685
      %v704 = vpop.xlane.xlu0 %703
      %705 = vmax.xlane.f32.xlu0 %v686
      %v706 = vpop.xlane.xlu0 %705
      %707 = vmax.xlane.f32.xlu0 %v687
      %v708 = vpop.xlane.xlu0 %707
      %709 = vmax.xlane.f32.xlu0 %v688
      %v710 = vpop.xlane.xlu0 %709
      %711 = vmax.xlane.f32.xlu0 %v689
      %v712 = vpop.xlane.xlu0 %711
      %713 = vmax.xlane.f32.xlu0 %v690
      %v714 = vpop.xlane.xlu0 %713
      %715 = vmax.xlane.f32.xlu0 %v691
      %v716 = vpop.xlane.xlu0 %715
      %717 = vmax.xlane.f32.xlu0 %v692
      %v718 = vpop.xlane.xlu0 %717
      %719 = vmax.xlane.f32.xlu0 %v693
      %v720 = vpop.xlane.xlu0 %719
      %721 = vmax.xlane.f32.xlu0 %v694
      %v722 = vpop.xlane.xlu0 %721
      %723 = vmax.xlane.f32.xlu0 %v695
      %v724 = vpop.xlane.xlu0 %723
      %725 = vmax.xlane.f32.xlu0 %v696
      %v726 = vpop.xlane.xlu0 %725
      %727 = vmax.xlane.f32.xlu0 %v697
      %v728 = vpop.xlane.xlu0 %727
      %729 = vmax.xlane.f32.xlu0 %v698
      %v730 = vpop.xlane.xlu0 %729
      %v731 = vsub.f32 %v683, %v700
      %v732 = vsub.f32 %v684, %v702
      %v733 = vsub.f32 %v685, %v704
      %v734 = vsub.f32 %v686, %v706
      %v735 = vsub.f32 %v687, %v708
      %v736 = vsub.f32 %v688, %v710
      %v737 = vsub.f32 %v689, %v712
      %v738 = vsub.f32 %v690, %v714
      %v739 = vsub.f32 %v691, %v716
      %v740 = vsub.f32 %v692, %v718
      %v741 = vsub.f32 %v693, %v720
      %v742 = vsub.f32 %v694, %v722
      %v743 = vsub.f32 %v695, %v724
      %v744 = vsub.f32 %v696, %v726
      %v745 = vsub.f32 %v697, %v728
      %v746 = vsub.f32 %v698, %v730
      %v747 = vmul.f32 %v731, 1.442695
      %v748 = vpow.pop %v747
      %v749 = vmul.f32 %v732, 1.442695
      %v750 = vpow.pop %v749
      %v751 = vmul.f32 %v733, 1.442695
      %v752 = vpow.pop %v751
      %v753 = vmul.f32 %v734, 1.442695
      %v754 = vpow.pop %v753
      %v755 = vmul.f32 %v735, 1.442695
      %v756 = vpow.pop %v755
      %v757 = vmul.f32 %v736, 1.442695
      %v758 = vpow.pop %v757
      %v759 = vmul.f32 %v737, 1.442695
      %v760 = vpow.pop %v759
      %v761 = vmul.f32 %v738, 1.442695
      %v762 = vpow.pop %v761
      %v763 = vmul.f32 %v739, 1.442695
      %v764 = vpow.pop %v763
      %v765 = vmul.f32 %v740, 1.442695
      %v766 = vpow.pop %v765
      %v767 = vmul.f32 %v741, 1.442695
      %v768 = vpow.pop %v767
      %v769 = vmul.f32 %v742, 1.442695
      %v770 = vpow.pop %v769
      %v771 = vmul.f32 %v743, 1.442695
      %v772 = vpow.pop %v771
      %v773 = vmul.f32 %v744, 1.442695
      %v774 = vpow.pop %v773
      %v775 = vmul.f32 %v745, 1.442695
      %v776 = vpow.pop %v775
      %v777 = vmul.f32 %v746, 1.442695
      %v778 = vpow.pop %v777
      %779 = vadd.xlane.f32.xlu0 %v748
      %v780 = vpop.xlane.xlu0 %779
      %781 = vadd.xlane.f32.xlu0 %v750
      %v782 = vpop.xlane.xlu0 %781
      %783 = vadd.xlane.f32.xlu0 %v752
      %v784 = vpop.xlane.xlu0 %783
      %785 = vadd.xlane.f32.xlu0 %v754
      %v786 = vpop.xlane.xlu0 %785
      %787 = vadd.xlane.f32.xlu0 %v756
      %v788 = vpop.xlane.xlu0 %787
      %789 = vadd.xlane.f32.xlu0 %v758
      %v790 = vpop.xlane.xlu0 %789
      %791 = vadd.xlane.f32.xlu0 %v760
      %v792 = vpop.xlane.xlu0 %791
      %793 = vadd.xlane.f32.xlu0 %v762
      %v794 = vpop.xlane.xlu0 %793
      %795 = vadd.xlane.f32.xlu0 %v764
      %v796 = vpop.xlane.xlu0 %795
      %797 = vadd.xlane.f32.xlu0 %v766
      %v798 = vpop.xlane.xlu0 %797
      %799 = vadd.xlane.f32.xlu0 %v768
      %v800 = vpop.xlane.xlu0 %799
      %801 = vadd.xlane.f32.xlu0 %v770
      %v802 = vpop.xlane.xlu0 %801
      %803 = vadd.xlane.f32.xlu0 %v772
      %v804 = vpop.xlane.xlu0 %803
      %805 = vadd.xlane.f32.xlu0 %v774
      %v806 = vpop.xlane.xlu0 %805
      %807 = vadd.xlane.f32.xlu0 %v776
      %v808 = vpop.xlane.xlu0 %807
      %809 = vadd.xlane.f32.xlu0 %v778
      %v810 = vpop.xlane.xlu0 %809
      %v811 = vlog2.pop %v780
      %v812 = vmul.f32 %v811, 0.6931472
      %v813 = vlog2.pop %v782
      %v814 = vmul.f32 %v813, 0.6931472
      %v815 = vlog2.pop %v784
      %v816 = vmul.f32 %v815, 0.6931472
      %v817 = vlog2.pop %v786
      %v818 = vmul.f32 %v817, 0.6931472
      %v819 = vlog2.pop %v788
      %v820 = vmul.f32 %v819, 0.6931472
      %v821 = vlog2.pop %v790
      %v822 = vmul.f32 %v821, 0.6931472
      %v823 = vlog2.pop %v792
      %v824 = vmul.f32 %v823, 0.6931472
      %v825 = vlog2.pop %v794
      %v826 = vmul.f32 %v825, 0.6931472
      %v827 = vlog2.pop %v796
      %v828 = vmul.f32 %v827, 0.6931472
      %v829 = vlog2.pop %v798
      %v830 = vmul.f32 %v829, 0.6931472
      %v831 = vlog2.pop %v800
      %v832 = vmul.f32 %v831, 0.6931472
      %v833 = vlog2.pop %v802
      %v834 = vmul.f32 %v833, 0.6931472
      %v835 = vlog2.pop %v804
      %v836 = vmul.f32 %v835, 0.6931472
      %v837 = vlog2.pop %v806
      %v838 = vmul.f32 %v837, 0.6931472
      %v839 = vlog2.pop %v808
      %v840 = vmul.f32 %v839, 0.6931472
      %v841 = vlog2.pop %v810
      %v842 = vmul.f32 %v841, 0.6931472
      %v843 = vsub.f32 %v731, %v812
      %v844 = vsub.f32 %v732, %v814
      %v845 = vsub.f32 %v733, %v816
      %v846 = vsub.f32 %v734, %v818
      %v847 = vsub.f32 %v735, %v820
      %v848 = vsub.f32 %v736, %v822
      %v849 = vsub.f32 %v737, %v824
      %v850 = vsub.f32 %v738, %v826
      %v851 = vsub.f32 %v739, %v828
      %v852 = vsub.f32 %v740, %v830
      %v853 = vsub.f32 %v741, %v832
      %v854 = vsub.f32 %v742, %v834
      %v855 = vsub.f32 %v743, %v836
      %v856 = vsub.f32 %v744, %v838
      %v857 = vsub.f32 %v745, %v840
      %v858 = vsub.f32 %v746, %v842
      %859 = vst [vmem:[%s175] sm:$0xff] %v843
      %860 = vst [vmem:[%s175 + $0x8] sm:$0xff] %v844
      %861 = vst [vmem:[%s175 + $0x10] sm:$0xff] %v845
      %862 = vst [vmem:[%s175 + $0x18] sm:$0xff] %v846
      %863 = vst [vmem:[%s175 + $0x20] sm:$0xff] %v847
      %864 = vst [vmem:[%s175 + $0x28] sm:$0xff] %v848
      %865 = vst [vmem:[%s175 + $0x30] sm:$0xff] %v849
      %866 = vst [vmem:[%s175 + $0x38] sm:$0xff] %v850
      %867 = vst [vmem:[%s175 + $0x40] sm:$0xff] %v851
      %868 = vst [vmem:[%s175 + $0x48] sm:$0xff] %v852
      %869 = vst [vmem:[%s175 + $0x50] sm:$0xff] %v853
      %870 = vst [vmem:[%s175 + $0x58] sm:$0xff] %v854
      %871 = vst [vmem:[%s175 + $0x60] sm:$0xff] %v855
      %872 = vst [vmem:[%s175 + $0x68] sm:$0xff] %v856
      %873 = vst [vmem:[%s175 + $0x70] sm:$0xff] %v857
      %874 = vst [vmem:[%s175 + $0x78] sm:$0xff] %v858
      %s875 = smul.u32 16, %s14
      %p876 = scmp.lt.s32.totalorder %s875, 47
      %s877 = scalar_select %p876, %s875, 47
      %s878 = smul.addr %s877, 8
      %s879 = scalar_lea.vmem %s3, %s878
      // Predicated region
      $region33: #{gcn_forward.7} parent=31 // pred_check
        %p880 = pneg %p100
      $region34: #{gcn_forward.7} parent=31 // pred_check_branch
        %882 = sbr.rel (%p880) target = $region36
      $region35: #{gcn_forward.7} parent=31 // pred_region
        %s883 = smul.u32 16, %s14
      $region36: #{gcn_forward.7} parent=31 // pred_fallthru
        _
    $region32: #{gcn_forward.7} parent=5 // pred_fallthru
      _
    %p884 = scmp.le.s32.totalorder 2, %s9
    // Predicated region
    $region37: #{gcn_forward.7} parent=5 // pred_check
      %p885 = pneg %p884
    $region38: #{gcn_forward.7} parent=5 // pred_check_branch
      %887 = sbr.rel (%p885) target = $region40
    $region39: #{gcn_forward.7} parent=5 // pred_region
      %s888 = ssub.s32 %s9, 2
      // Predicated region
      $region41: #{gcn_forward.7} parent=39 // pred_check
        %p889 = pneg %p106
      $region42: #{gcn_forward.7} parent=39 // pred_check_branch
        %891 = sbr.rel (%p889) target = $region44
      $region43: #{gcn_forward.7} parent=39 // pred_region
        %s892 = smul.u32 16, %s15
        %p893 = scmp.lt.s32.totalorder %s892, 47
        %s894 = scalar_select %p893, %s892, 47
        %s895 = smul.addr %s894, 8
        %s896 = scalar_lea.vmem %s3, %s895
      $region44: #{gcn_forward.7} parent=39 // pred_fallthru
        _
    $region40: #{gcn_forward.7} parent=5 // pred_fallthru
      _
  $region6: #{gcn_forward.7} parent=0 // loop_footer
    %s13 = sadd.s32 1, %s9
  $region7: #{gcn_forward.7} parent=0 // loop_footer_branch
    %8 = sbr.rel target = $region3
  $region8: #{gcn_forward.7} parent=0 // loop_exit
    _

</llo_original>
